<compile_context>
chip_gen: v7x
topology: tpu7x:2x2x1
jax: 0.10.0
libtpu: 0.0.40
codegen_flags: <defaults>
</compile_context>

<pallas_src>
import jax
import jax.numpy as jnp
from jax.experimental import pallas as pl
from jax.experimental.pallas import tpu as pltpu

# Set to jnp.bfloat16 on v6e/v7x for higher MXU throughput / half weight bytes
# (accumulation stays f32).  f32 default = bit-faithful to the PyTorch module.
MATMUL_DTYPE = jnp.float32


# ----------------------------------------------------------------------------
# Kernel 1: hoisted, time-parallel input projection  G_x = x @ Wx + b
# ----------------------------------------------------------------------------
def _input_proj_kernel(x_ref, wx_ref, b_ref, o_ref):
    o_ref[...] = (jnp.dot(x_ref[...], wx_ref[...],
                          preferred_element_type=jnp.float32)
                  + b_ref[...])


def input_projection(x_flat, wx, b):
    """x_flat: (T*B, In), wx: (In, 4H), b: (1, 4H) -> (T*B, 4H) f32."""
    TB = x_flat.shape[0]
    H4 = wx.shape[-1]
    # TODO(synk): tile over rows (grid) once T*B gets large; one block is fine
    # at these sizes and keeps dispatch overhead to a single call.
    return pl.pallas_call(
        _input_proj_kernel,
        out_shape=jax.ShapeDtypeStruct((TB, H4), jnp.float32),
    )(x_flat.astype(MATMUL_DTYPE), wx.astype(MATMUL_DTYPE), b)


# ----------------------------------------------------------------------------
# Kernel 2: sequential recurrence.  One grid step == one timestep.
# Only the h @ Wh matmul + elementwise gate math remain inside the recurrence.
# ----------------------------------------------------------------------------
def _lstm_recurrent_kernel(gx_ref, wh_ref, h0_ref, c0_ref,
                           out_ref, hN_ref, cN_ref, h_scr, c_scr):
    t = pl.program_id(0)

    @pl.when(t == 0)
    def _():
        h_scr[...] = h0_ref[...]
        c_scr[...] = c0_ref[...]

    h = h_scr[...]                       # (B, H) f32 carried state
    c = c_scr[...]
    h_mm = h.astype(wh_ref.dtype)        # matmul-operand dtype (f32 or bf16)

    gx = gx_ref[0]                       # (4, B, H): gate-major input gates

    # Per-gate recurrent matmul against statically-sliced (H, H) weight blocks:
    # each gate result is a whole (B, H) tile (no lane-slicing of a 4H result).
    f_t = gx[0] + jnp.dot(h_mm, wh_ref[0], preferred_element_type=jnp.float32)
    i_t = gx[1] + jnp.dot(h_mm, wh_ref[1], preferred_element_type=jnp.float32)
    g_t = gx[2] + jnp.dot(h_mm, wh_ref[2], preferred_element_type=jnp.float32)
    o_t = gx[3] + jnp.dot(h_mm, wh_ref[3], preferred_element_type=jnp.float32)

    c_new = c * jax.nn.sigmoid(f_t) + jax.nn.sigmoid(i_t) * jnp.tanh(g_t)
    h_new = o_t * jnp.tanh(c_new)        # reference quirk: NO sigmoid on o_t

    h_scr[...] = h_new
    c_scr[...] = c_new

    # Output block is VMEM-resident across the whole grid (constant index map);
    # each step stores one row into VMEM, HBM writeback happens once at the end.
    out_ref[t] = h_new

    @pl.when(t == pl.num_programs(0) - 1)
    def _():
        hN_ref[...] = h_new
        cN_ref[...] = c_new


def lstm_layer(x_tbe, h0, c0, wx, wh_gmajor, b):
    """One unidirectional LSTM layer (mode=None).

    x_tbe:     (T, B, In) f32, time-major
    h0, c0:    (B, H)     f32
    wx:        (In, 4H)   pre-transposed U_f weight
    wh_gmajor: (4, H, H)  pre-transposed, gate-major W_f weight
    b:         (1, 4H)    U_f.bias + W_f.bias
    returns (out (T, B, H), h_final (B, H), c_final (B, H))
    """
    T, B, In = x_tbe.shape
    H = h0.shape[-1]

    # Hoisted time-parallel projection: one big matmul over all timesteps.
    gx = input_projection(x_tbe.reshape(T * B, In), wx, b)
    # Gate-major per-step layout (T, 4, B, H): gate extraction in the kernel is
    # a leading-axis index (whole tiles), never a sub-128-lane slice.
    gx = gx.reshape(T, B, 4, H).transpose(0, 2, 1, 3)

    out, hN, cN = pl.pallas_call(
        _lstm_recurrent_kernel,
        grid=(T,),
        in_specs=[
            pl.BlockSpec((1, 4, B, H), lambda t: (t, 0, 0, 0)),  # gx[t]
            pl.BlockSpec((4, H, H), lambda t: (0, 0, 0)),        # Wh (resident)
            pl.BlockSpec((B, H), lambda t: (0, 0)),              # h0
            pl.BlockSpec((B, H), lambda t: (0, 0)),              # c0
        ],
        out_specs=[
            pl.BlockSpec((T, B, H), lambda t: (0, 0, 0)),  # resident output slab
            pl.BlockSpec((B, H), lambda t: (0, 0)),        # final h
            pl.BlockSpec((B, H), lambda t: (0, 0)),        # final c
        ],
        out_shape=[
            jax.ShapeDtypeStruct((T, B, H), jnp.float32),
            jax.ShapeDtypeStruct((B, H), jnp.float32),
            jax.ShapeDtypeStruct((B, H), jnp.float32),
        ],
        scratch_shapes=[pltpu.VMEM((B, H), jnp.float32),   # carried h
                        pltpu.VMEM((B, H), jnp.float32)],  # carried c
        compiler_params=pltpu.CompilerParams(
            dimension_semantics=("arbitrary",)),           # sequential recurrence
        # TODO(synk): on v7x, add a leading "parallel" batch-tile grid axis once
        # B is large enough (>= 2 sublane-aligned tiles) to use both TensorCores.
    )(gx, wh_gmajor, h0, c0)
    return out, hN, cN


# ----------------------------------------------------------------------------
# LSTMBlock forward (matches the PyTorch module; fully jitted)
# ----------------------------------------------------------------------------
@jax.jit
def lstm_block_forward(params, x_bte, hidden_state=None, cell_state=None):
    """x: (B, T, In) -> (out (B, T, H), h (B, H), c (B, H)).

    Each layer's final (h, c) seeds the next layer, exactly like LSTMBlock.
    """
    B = x_bte.shape[0]
    H = params["layers"][0]["wh"].shape[-1]
    h = jnp.zeros((B, H), jnp.float32) if hidden_state is None else hidden_state
    c = jnp.zeros((B, H), jnp.float32) if cell_state is None else cell_state
    x = jnp.transpose(x_bte, (1, 0, 2))             # time-major inside kernels
    for p in params["layers"]:
        x, h, c = lstm_layer(x, h, c, p["wx"], p["wh"], p["b"])
    return jnp.transpose(x, (1, 0, 2)), h, c


# ----------------------------------------------------------------------------
# Parameter init (mimics nn.Linear defaults; only U_f / W_f used for mode=None)
# ----------------------------------------------------------------------------
def _linear_params(key, fan_in, fan_out):
    k = 1.0 / (fan_in ** 0.5)
    kw, kb = jax.random.split(key)
    w = jax.random.uniform(kw, (fan_in, fan_out), jnp.float32, -k, k)
    b = jax.random.uniform(kb, (1, fan_out), jnp.float32, -k, k)
    return w, b


def init_lstm_layer_params(key, in_size, hidden):
    k1, k2 = jax.random.split(key)
    wx, bx = _linear_params(k1, in_size, 4 * hidden)
    wh_flat, bh = _linear_params(k2, hidden, 4 * hidden)
    # gate-major recurrent weight: (4, H, H), [g] == wh_flat[:, g*H:(g+1)*H]
    wh = wh_flat.reshape(hidden, 4, hidden).transpose(1, 0, 2)
    return {"wx": wx, "wh": wh.astype(MATMUL_DTYPE), "b": bx + bh}


# ----------------------------------------------------------------------------
# Plain-JAX reference (mirrors the PyTorch LSTMLayer/LSTMBlock mode=None path)
# ----------------------------------------------------------------------------
def _lstm_block_reference(params, x_bte, h0, c0):
    B, T, _ = x_bte.shape
    hp = jax.lax.Precision.HIGHEST
    x, h, c = x_bte, h0, c0
    for p in params["layers"]:
        H = p["wh"].shape[-1]
        wx = p["wx"].astype(jnp.float32)
        wh = p["wh"].astype(jnp.float32).transpose(1, 0, 2).reshape(H, 4 * H)
        b = p["b"]
        outs, hh, cc = [], h, c
        for t in range(T):
            x_t = x[:, t, :]
            gates = (jnp.dot(x_t, wx, precision=hp)
                     + jnp.dot(hh, wh, precision=hp) + b)
            f_t, i_t, g_t, o_t = jnp.split(gates, 4, axis=-1)
            cc = cc * jax.nn.sigmoid(f_t) + jax.nn.sigmoid(i_t) * jnp.tanh(g_t)
            hh = o_t * jnp.tanh(cc)          # no sigmoid on o_t (reference quirk)
            outs.append(hh)
        x = jnp.stack(outs, axis=1)
        h, c = hh, cc
    return x, h, c


# ----------------------------------------------------------------------------
if __name__ == "__main__":
    embedding_dim, hidden_dim = 16, 32
    B, T = 2, 8

    key = jax.random.PRNGKey(0)
    k_x, k_l0, k_l1 = jax.random.split(key, 3)

    params = {
        "layers": [
            init_lstm_layer_params(k_l0, embedding_dim, hidden_dim),
            init_lstm_layer_params(k_l1, hidden_dim, hidden_dim),
        ],
    }

    x = jax.random.normal(k_x, (B, T, embedding_dim), jnp.float32)

    out, h_n, c_n = lstm_block_forward(params, x)
    jax.block_until_ready((out, h_n, c_n))

    assert out.shape == (B, T, hidden_dim) and out.dtype == jnp.float32
    assert h_n.shape == (B, hidden_dim) and c_n.shape == (B, hidden_dim)

    # Validate against the plain-JAX reference (tolerance assumes f32 matmuls).
    h0 = jnp.zeros((B, hidden_dim), jnp.float32)
    c0 = jnp.zeros((B, hidden_dim), jnp.float32)
    out_ref, h_ref, c_ref = _lstm_block_reference(params, x, h0, c0)
    assert jnp.allclose(out, out_ref, atol=1e-3, rtol=1e-3)
    assert jnp.allclose(h_n, h_ref, atol=1e-3, rtol=1e-3)
    assert jnp.allclose(c_n, c_ref, atol=1e-3, rtol=1e-3)

    print("KERNEL_OK")
</pallas_src>

<mosaic_0001>
module attributes {stable_mosaic.version = 11 : i64} {
  func.func @_input_proj_kernel(%arg0: memref<16x16xf32, #tpu.memory_space<vmem>>, %arg1: memref<16x128xf32, #tpu.memory_space<vmem>>, %arg2: memref<1x128xf32, #tpu.memory_space<vmem>>, %arg3: memref<16x128xf32, #tpu.memory_space<vmem>>) attributes {dimension_semantics = [], scalar_prefetch = 0 : i64, scratch_operands = 0 : i64, tpu.core_type = #tpu.core_type<tc>} {
    %c0 = arith.constant 0 : index
    %c0_0 = arith.constant 0 : index
    %0 = vector.load %arg0[%c0, %c0_0] : memref<16x16xf32, #tpu.memory_space<vmem>>, vector<16x16xf32>
    %c0_1 = arith.constant 0 : index
    %c0_2 = arith.constant 0 : index
    %1 = vector.load %arg1[%c0_1, %c0_2] : memref<16x128xf32, #tpu.memory_space<vmem>>, vector<16x128xf32>
    %cst = arith.constant dense<0.000000e+00> : vector<16x128xf32>
    %2 = tpu.matmul %0, %1, %cst {dimension_numbers = #tpu.dot_dimension_numbers<[1], [0], [0], [1], [0, 0, 1, 1], [], []>} : vector<16x16xf32>, vector<16x128xf32>, vector<16x128xf32> -> vector<16x128xf32>
    %c0_3 = arith.constant 0 : index
    %c0_4 = arith.constant 0 : index
    %3 = vector.load %arg2[%c0_3, %c0_4] : memref<1x128xf32, #tpu.memory_space<vmem>>, vector<1x128xf32>
    %4 = vector.broadcast %3 : vector<1x128xf32> to vector<16x128xf32>
    %5 = arith.addf %2, %4 : vector<16x128xf32>
    %c0_5 = arith.constant 0 : index
    %c0_6 = arith.constant 0 : index
    %6 = vector.load %arg3[%c0_5, %c0_6] : memref<16x128xf32, #tpu.memory_space<vmem>>, vector<16x128xf32>
    tpu.vector_store %arg3[%c0_5, %c0_6], %5 {strides = array<i32>} : memref<16x128xf32, #tpu.memory_space<vmem>>, vector<16x128xf32>,
    return
  }
}

module attributes {stable_mosaic.version = 11 : i64} {
  func.func @_input_proj_kernel(%arg0: memref<16x32xf32, #tpu.memory_space<vmem>>, %arg1: memref<32x128xf32, #tpu.memory_space<vmem>>, %arg2: memref<1x128xf32, #tpu.memory_space<vmem>>, %arg3: memref<16x128xf32, #tpu.memory_space<vmem>>) attributes {dimension_semantics = [], scalar_prefetch = 0 : i64, scratch_operands = 0 : i64, tpu.core_type = #tpu.core_type<tc>} {
    %c0 = arith.constant 0 : index
    %c0_0 = arith.constant 0 : index
    %0 = vector.load %arg0[%c0, %c0_0] : memref<16x32xf32, #tpu.memory_space<vmem>>, vector<16x32xf32>
    %c0_1 = arith.constant 0 : index
    %c0_2 = arith.constant 0 : index
    %1 = vector.load %arg1[%c0_1, %c0_2] : memref<32x128xf32, #tpu.memory_space<vmem>>, vector<32x128xf32>
    %cst = arith.constant dense<0.000000e+00> : vector<16x128xf32>
    %2 = tpu.matmul %0, %1, %cst {dimension_numbers = #tpu.dot_dimension_numbers<[1], [0], [0], [1], [0, 0, 1, 1], [], []>} : vector<16x32xf32>, vector<32x128xf32>, vector<16x128xf32> -> vector<16x128xf32>
    %c0_3 = arith.constant 0 : index
    %c0_4 = arith.constant 0 : index
    %3 = vector.load %arg2[%c0_3, %c0_4] : memref<1x128xf32, #tpu.memory_space<vmem>>, vector<1x128xf32>
    %4 = vector.broadcast %3 : vector<1x128xf32> to vector<16x128xf32>
    %5 = arith.addf %2, %4 : vector<16x128xf32>
    %c0_5 = arith.constant 0 : index
    %c0_6 = arith.constant 0 : index
    %6 = vector.load %arg3[%c0_5, %c0_6] : memref<16x128xf32, #tpu.memory_space<vmem>>, vector<16x128xf32>
    tpu.vector_store %arg3[%c0_5, %c0_6], %5 {strides = array<i32>} : memref<16x128xf32, #tpu.memory_space<vmem>>, vector<16x128xf32>,
    return
  }
}

module attributes {stable_mosaic.version = 11 : i64} {
  func.func @_lstm_recurrent_kernel(%arg0: i32, %arg1: memref<1x4x2x32xf32, #tpu.memory_space<vmem>>, %arg2: memref<4x32x32xf32, #tpu.memory_space<vmem>>, %arg3: memref<2x32xf32, #tpu.memory_space<vmem>>, %arg4: memref<2x32xf32, #tpu.memory_space<vmem>>, %arg5: memref<8x2x32xf32, #tpu.memory_space<vmem>>, %arg6: memref<2x32xf32, #tpu.memory_space<vmem>>, %arg7: memref<2x32xf32, #tpu.memory_space<vmem>>, %arg8: memref<2x32xf32, #tpu.memory_space<vmem>>, %arg9: memref<2x32xf32, #tpu.memory_space<vmem>>) attributes {dimension_semantics = [#tpu.dimension_semantics<arbitrary>], iteration_bounds = array<i64: 8>, scalar_prefetch = 0 : i64, scratch_operands = 2 : i64, tpu.core_type = #tpu.core_type<tc>, window_params = [{transform_indices = @transform_0, window_bounds = array<i64: 1, 4, 2, 32>}, {pipeline_mode = #tpu.pipeline_mode<synchronous>, transform_indices = @transform_1, window_bounds = array<i64: 4, 32, 32>}, {pipeline_mode = #tpu.pipeline_mode<synchronous>, transform_indices = @transform_2, window_bounds = array<i64: 2, 32>}, {pipeline_mode = #tpu.pipeline_mode<synchronous>, transform_indices = @transform_3, window_bounds = array<i64: 2, 32>}, {pipeline_mode = #tpu.pipeline_mode<synchronous>, transform_indices = @transform_4, window_bounds = array<i64: 8, 2, 32>}, {pipeline_mode = #tpu.pipeline_mode<synchronous>, transform_indices = @transform_5, window_bounds = array<i64: 2, 32>}, {pipeline_mode = #tpu.pipeline_mode<synchronous>, transform_indices = @transform_6, window_bounds = array<i64: 2, 32>}]} {
    %c0_i32 = arith.constant 0 : i32
    %0 = arith.cmpi eq, %arg0, %c0_i32 : i32
    %1 = arith.extui %0 : i1 to i32
    %c0_i32_0 = arith.constant 0 : i32
    %2 = arith.cmpi ne, %1, %c0_i32_0 : i32
    scf.if %2 {
      %c0_29 = arith.constant 0 : index
      %c0_30 = arith.constant 0 : index
      %56 = vector.load %arg3[%c0_29, %c0_30] : memref<2x32xf32, #tpu.memory_space<vmem>>, vector<2x32xf32>
      %c0_31 = arith.constant 0 : index
      %c0_32 = arith.constant 0 : index
      %57 = vector.load %arg8[%c0_31, %c0_32] : memref<2x32xf32, #tpu.memory_space<vmem>>, vector<2x32xf32>
      tpu.vector_store %arg8[%c0_31, %c0_32], %56 {strides = array<i32>} : memref<2x32xf32, #tpu.memory_space<vmem>>, vector<2x32xf32>,
      %c0_33 = arith.constant 0 : index
      %c0_34 = arith.constant 0 : index
      %58 = vector.load %arg4[%c0_33, %c0_34] : memref<2x32xf32, #tpu.memory_space<vmem>>, vector<2x32xf32>
      %c0_35 = arith.constant 0 : index
      %c0_36 = arith.constant 0 : index
      %59 = vector.load %arg9[%c0_35, %c0_36] : memref<2x32xf32, #tpu.memory_space<vmem>>, vector<2x32xf32>
      tpu.vector_store %arg9[%c0_35, %c0_36], %58 {strides = array<i32>} : memref<2x32xf32, #tpu.memory_space<vmem>>, vector<2x32xf32>,
    } else {
    }
    %c0 = arith.constant 0 : index
    %c0_1 = arith.constant 0 : index
    %3 = vector.load %arg8[%c0, %c0_1] : memref<2x32xf32, #tpu.memory_space<vmem>>, vector<2x32xf32>
    %c0_2 = arith.constant 0 : index
    %c0_3 = arith.constant 0 : index
    %4 = vector.load %arg9[%c0_2, %c0_3] : memref<2x32xf32, #tpu.memory_space<vmem>>, vector<2x32xf32>
    %c0_4 = arith.constant 0 : index
    %c0_5 = arith.constant 0 : index
    %c0_6 = arith.constant 0 : index
    %c0_7 = arith.constant 0 : index
    %5 = vector.load %arg1[%c0_4, %c0_5, %c0_6, %c0_7] : memref<1x4x2x32xf32, #tpu.memory_space<vmem>>, vector<1x4x2x32xf32>
    %6 = vector.shape_cast %5 : vector<1x4x2x32xf32> to vector<4x2x32xf32>
    %7 = vector.extract_strided_slice %6 {offsets = [0, 0, 0], sizes = [1, 2, 32], strides = [1, 1, 1]} : vector<4x2x32xf32> to vector<1x2x32xf32>
    %8 = vector.shape_cast %7 : vector<1x2x32xf32> to vector<2x32xf32>
    %c0_8 = arith.constant 0 : index
    %c0_9 = arith.constant 0 : index
    %c0_10 = arith.constant 0 : index
    %9 = vector.load %arg2[%c0_8, %c0_9, %c0_10] : memref<4x32x32xf32, #tpu.memory_space<vmem>>, vector<1x32x32xf32>
    %10 = vector.shape_cast %9 : vector<1x32x32xf32> to vector<32x32xf32>
    %cst = arith.constant dense<0.000000e+00> : vector<2x32xf32>
    %11 = tpu.matmul %3, %10, %cst {dimension_numbers = #tpu.dot_dimension_numbers<[1], [0], [0], [1], [0, 0, 1, 1], [], []>} : vector<2x32xf32>, vector<32x32xf32>, vector<2x32xf32> -> vector<2x32xf32>
    %12 = arith.addf %8, %11 : vector<2x32xf32>
    %13 = vector.extract_strided_slice %6 {offsets = [1, 0, 0], sizes = [1, 2, 32], strides = [1, 1, 1]} : vector<4x2x32xf32> to vector<1x2x32xf32>
    %14 = vector.shape_cast %13 : vector<1x2x32xf32> to vector<2x32xf32>
    %c1 = arith.constant 1 : index
    %c0_11 = arith.constant 0 : index
    %c0_12 = arith.constant 0 : index
    %15 = vector.load %arg2[%c1, %c0_11, %c0_12] : memref<4x32x32xf32, #tpu.memory_space<vmem>>, vector<1x32x32xf32>
    %16 = vector.shape_cast %15 : vector<1x32x32xf32> to vector<32x32xf32>
    %cst_13 = arith.constant dense<0.000000e+00> : vector<2x32xf32>
    %17 = tpu.matmul %3, %16, %cst_13 {dimension_numbers = #tpu.dot_dimension_numbers<[1], [0], [0], [1], [0, 0, 1, 1], [], []>} : vector<2x32xf32>, vector<32x32xf32>, vector<2x32xf32> -> vector<2x32xf32>
    %18 = arith.addf %14, %17 : vector<2x32xf32>
    %19 = vector.extract_strided_slice %6 {offsets = [2, 0, 0], sizes = [1, 2, 32], strides = [1, 1, 1]} : vector<4x2x32xf32> to vector<1x2x32xf32>
    %20 = vector.shape_cast %19 : vector<1x2x32xf32> to vector<2x32xf32>
    %c2 = arith.constant 2 : index
    %c0_14 = arith.constant 0 : index
    %c0_15 = arith.constant 0 : index
    %21 = vector.load %arg2[%c2, %c0_14, %c0_15] : memref<4x32x32xf32, #tpu.memory_space<vmem>>, vector<1x32x32xf32>
    %22 = vector.shape_cast %21 : vector<1x32x32xf32> to vector<32x32xf32>
    %cst_16 = arith.constant dense<0.000000e+00> : vector<2x32xf32>
    %23 = tpu.matmul %3, %22, %cst_16 {dimension_numbers = #tpu.dot_dimension_numbers<[1], [0], [0], [1], [0, 0, 1, 1], [], []>} : vector<2x32xf32>, vector<32x32xf32>, vector<2x32xf32> -> vector<2x32xf32>
    %24 = arith.addf %20, %23 : vector<2x32xf32>
    %25 = vector.extract_strided_slice %6 {offsets = [3, 0, 0], sizes = [1, 2, 32], strides = [1, 1, 1]} : vector<4x2x32xf32> to vector<1x2x32xf32>
    %26 = vector.shape_cast %25 : vector<1x2x32xf32> to vector<2x32xf32>
    %c3 = arith.constant 3 : index
    %c0_17 = arith.constant 0 : index
    %c0_18 = arith.constant 0 : index
    %27 = vector.load %arg2[%c3, %c0_17, %c0_18] : memref<4x32x32xf32, #tpu.memory_space<vmem>>, vector<1x32x32xf32>
    %28 = vector.shape_cast %27 : vector<1x32x32xf32> to vector<32x32xf32>
    %cst_19 = arith.constant dense<0.000000e+00> : vector<2x32xf32>
    %29 = tpu.matmul %3, %28, %cst_19 {dimension_numbers = #tpu.dot_dimension_numbers<[1], [0], [0], [1], [0, 0, 1, 1], [], []>} : vector<2x32xf32>, vector<32x32xf32>, vector<2x32xf32> -> vector<2x32xf32>
    %30 = arith.addf %26, %29 : vector<2x32xf32>
    %31 = arith.negf %12 : vector<2x32xf32>
    %32 = math.exp %31 : vector<2x32xf32>
    %cst_20 = arith.constant 1.000000e+00 : f32
    %33 = vector.broadcast %cst_20 : f32 to vector<2x32xf32>
    %34 = arith.addf %33, %32 : vector<2x32xf32>
    %35 = arith.divf %33, %34 : vector<2x32xf32>
    %36 = arith.mulf %4, %35 : vector<2x32xf32>
    %37 = arith.negf %18 : vector<2x32xf32>
    %38 = math.exp %37 : vector<2x32xf32>
    %cst_21 = arith.constant 1.000000e+00 : f32
    %39 = vector.broadcast %cst_21 : f32 to vector<2x32xf32>
    %40 = arith.addf %39, %38 : vector<2x32xf32>
    %41 = arith.divf %39, %40 : vector<2x32xf32>
    %42 = math.tanh %24 : vector<2x32xf32>
    %43 = arith.mulf %41, %42 : vector<2x32xf32>
    %44 = arith.addf %36, %43 : vector<2x32xf32>
    %45 = math.tanh %44 : vector<2x32xf32>
    %46 = arith.mulf %30, %45 : vector<2x32xf32>
    %c0_22 = arith.constant 0 : index
    %c0_23 = arith.constant 0 : index
    %47 = vector.load %arg8[%c0_22, %c0_23] : memref<2x32xf32, #tpu.memory_space<vmem>>, vector<2x32xf32>
    tpu.vector_store %arg8[%c0_22, %c0_23], %46 {strides = array<i32>} : memref<2x32xf32, #tpu.memory_space<vmem>>, vector<2x32xf32>,
    %c0_24 = arith.constant 0 : index
    %c0_25 = arith.constant 0 : index
    %48 = vector.load %arg9[%c0_24, %c0_25] : memref<2x32xf32, #tpu.memory_space<vmem>>, vector<2x32xf32>
    tpu.vector_store %arg9[%c0_24, %c0_25], %44 {strides = array<i32>} : memref<2x32xf32, #tpu.memory_space<vmem>>, vector<2x32xf32>,
    %49 = arith.index_cast %arg0 : i32 to index
    %c0_26 = arith.constant 0 : index
    %c0_27 = arith.constant 0 : index
    %50 = vector.load %arg5[%49, %c0_26, %c0_27] : memref<8x2x32xf32, #tpu.memory_space<vmem>>, vector<1x2x32xf32>
    %51 = vector.shape_cast %50 : vector<1x2x32xf32> to vector<2x32xf32>
    %52 = vector.shape_cast %46 : vector<2x32xf32> to vector<1x2x32xf32>
    tpu.vector_store %arg5[%49, %c0_26, %c0_27], %52 {strides = array<i32>} : memref<8x2x32xf32, #tpu.memory_space<vmem>>, vector<1x2x32xf32>,
    %c7_i32 = arith.constant 7 : i32
    %53 = arith.cmpi eq, %arg0, %c7_i32 : i32
    %54 = arith.extui %53 : i1 to i32
    %c0_i32_28 = arith.constant 0 : i32
    %55 = arith.cmpi ne, %54, %c0_i32_28 : i32
    scf.if %55 {
      %c0_29 = arith.constant 0 : index
      %c0_30 = arith.constant 0 : index
      %56 = vector.load %arg6[%c0_29, %c0_30] : memref<2x32xf32, #tpu.memory_space<vmem>>, vector<2x32xf32>
      tpu.vector_store %arg6[%c0_29, %c0_30], %46 {strides = array<i32>} : memref<2x32xf32, #tpu.memory_space<vmem>>, vector<2x32xf32>,
      %c0_31 = arith.constant 0 : index
      %c0_32 = arith.constant 0 : index
      %57 = vector.load %arg7[%c0_31, %c0_32] : memref<2x32xf32, #tpu.memory_space<vmem>>, vector<2x32xf32>
      tpu.vector_store %arg7[%c0_31, %c0_32], %44 {strides = array<i32>} : memref<2x32xf32, #tpu.memory_space<vmem>>, vector<2x32xf32>,
    } else {
    }
    return
  }
  func.func @transform_0(%arg0: i32) -> (i32, i32, i32, i32) {
    %c0_i32 = arith.constant 0 : i32
    %c0_i32_0 = arith.constant 0 : i32
    %c0_i32_1 = arith.constant 0 : i32
    %c0_i32_2 = arith.constant 0 : i32
    return %arg0, %c0_i32, %c0_i32_0, %c0_i32_1 : i32, i32, i32, i32
  }
  func.func @transform_1(%arg0: i32) -> (i32, i32, i32) {
    %c0_i32 = arith.constant 0 : i32
    %c0_i32_0 = arith.constant 0 : i32
    %c0_i32_1 = arith.constant 0 : i32
    %c0_i32_2 = arith.constant 0 : i32
    return %c0_i32, %c0_i32_0, %c0_i32_1 : i32, i32, i32
  }
  func.func @transform_2(%arg0: i32) -> (i32, i32) {
    %c0_i32 = arith.constant 0 : i32
    %c0_i32_0 = arith.constant 0 : i32
    %c0_i32_1 = arith.constant 0 : i32
    return %c0_i32, %c0_i32_0 : i32, i32
  }
  func.func @transform_3(%arg0: i32) -> (i32, i32) {
    %c0_i32 = arith.constant 0 : i32
    %c0_i32_0 = arith.constant 0 : i32
    %c0_i32_1 = arith.constant 0 : i32
    return %c0_i32, %c0_i32_0 : i32, i32
  }
  func.func @transform_4(%arg0: i32) -> (i32, i32, i32) {
    %c0_i32 = arith.constant 0 : i32
    %c0_i32_0 = arith.constant 0 : i32
    %c0_i32_1 = arith.constant 0 : i32
    %c0_i32_2 = arith.constant 0 : i32
    return %c0_i32, %c0_i32_0, %c0_i32_1 : i32, i32, i32
  }
  func.func @transform_5(%arg0: i32) -> (i32, i32) {
    %c0_i32 = arith.constant 0 : i32
    %c0_i32_0 = arith.constant 0 : i32
    %c0_i32_1 = arith.constant 0 : i32
    return %c0_i32, %c0_i32_0 : i32, i32
  }
  func.func @transform_6(%arg0: i32) -> (i32, i32) {
    %c0_i32 = arith.constant 0 : i32
    %c0_i32_0 = arith.constant 0 : i32
    %c0_i32_1 = arith.constant 0 : i32
    return %c0_i32, %c0_i32_0 : i32, i32
  }
}

module attributes {stable_mosaic.version = 11 : i64} {
  func.func @_lstm_recurrent_kernel(%arg0: i32, %arg1: memref<1x4x2x32xf32, #tpu.memory_space<vmem>>, %arg2: memref<4x32x32xf32, #tpu.memory_space<vmem>>, %arg3: memref<2x32xf32, #tpu.memory_space<vmem>>, %arg4: memref<2x32xf32, #tpu.memory_space<vmem>>, %arg5: memref<8x2x32xf32, #tpu.memory_space<vmem>>, %arg6: memref<2x32xf32, #tpu.memory_space<vmem>>, %arg7: memref<2x32xf32, #tpu.memory_space<vmem>>, %arg8: memref<2x32xf32, #tpu.memory_space<vmem>>, %arg9: memref<2x32xf32, #tpu.memory_space<vmem>>) attributes {dimension_semantics = [#tpu.dimension_semantics<arbitrary>], iteration_bounds = array<i64: 8>, scalar_prefetch = 0 : i64, scratch_operands = 2 : i64, tpu.core_type = #tpu.core_type<tc>, window_params = [{transform_indices = @transform_0, window_bounds = array<i64: 1, 4, 2, 32>}, {pipeline_mode = #tpu.pipeline_mode<synchronous>, transform_indices = @transform_1, window_bounds = array<i64: 4, 32, 32>}, {pipeline_mode = #tpu.pipeline_mode<synchronous>, transform_indices = @transform_2, window_bounds = array<i64: 2, 32>}, {pipeline_mode = #tpu.pipeline_mode<synchronous>, transform_indices = @transform_3, window_bounds = array<i64: 2, 32>}, {pipeline_mode = #tpu.pipeline_mode<synchronous>, transform_indices = @transform_4, window_bounds = array<i64: 8, 2, 32>}, {pipeline_mode = #tpu.pipeline_mode<synchronous>, transform_indices = @transform_5, window_bounds = array<i64: 2, 32>}, {pipeline_mode = #tpu.pipeline_mode<synchronous>, transform_indices = @transform_6, window_bounds = array<i64: 2, 32>}]} {
    %c0_i32 = arith.constant 0 : i32
    %0 = arith.cmpi eq, %arg0, %c0_i32 : i32
    %1 = arith.extui %0 : i1 to i32
    %c0_i32_0 = arith.constant 0 : i32
    %2 = arith.cmpi ne, %1, %c0_i32_0 : i32
    scf.if %2 {
      %c0_29 = arith.constant 0 : index
      %c0_30 = arith.constant 0 : index
      %56 = vector.load %arg3[%c0_29, %c0_30] : memref<2x32xf32, #tpu.memory_space<vmem>>, vector<2x32xf32>
      %c0_31 = arith.constant 0 : index
      %c0_32 = arith.constant 0 : index
      %57 = vector.load %arg8[%c0_31, %c0_32] : memref<2x32xf32, #tpu.memory_space<vmem>>, vector<2x32xf32>
      tpu.vector_store %arg8[%c0_31, %c0_32], %56 {strides = array<i32>} : memref<2x32xf32, #tpu.memory_space<vmem>>, vector<2x32xf32>,
      %c0_33 = arith.constant 0 : index
      %c0_34 = arith.constant 0 : index
      %58 = vector.load %arg4[%c0_33, %c0_34] : memref<2x32xf32, #tpu.memory_space<vmem>>, vector<2x32xf32>
      %c0_35 = arith.constant 0 : index
      %c0_36 = arith.constant 0 : index
      %59 = vector.load %arg9[%c0_35, %c0_36] : memref<2x32xf32, #tpu.memory_space<vmem>>, vector<2x32xf32>
      tpu.vector_store %arg9[%c0_35, %c0_36], %58 {strides = array<i32>} : memref<2x32xf32, #tpu.memory_space<vmem>>, vector<2x32xf32>,
    } else {
    }
    %c0 = arith.constant 0 : index
    %c0_1 = arith.constant 0 : index
    %3 = vector.load %arg8[%c0, %c0_1] : memref<2x32xf32, #tpu.memory_space<vmem>>, vector<2x32xf32>
    %c0_2 = arith.constant 0 : index
    %c0_3 = arith.constant 0 : index
    %4 = vector.load %arg9[%c0_2, %c0_3] : memref<2x32xf32, #tpu.memory_space<vmem>>, vector<2x32xf32>
    %c0_4 = arith.constant 0 : index
    %c0_5 = arith.constant 0 : index
    %c0_6 = arith.constant 0 : index
    %c0_7 = arith.constant 0 : index
    %5 = vector.load %arg1[%c0_4, %c0_5, %c0_6, %c0_7] : memref<1x4x2x32xf32, #tpu.memory_space<vmem>>, vector<1x4x2x32xf32>
    %6 = vector.shape_cast %5 : vector<1x4x2x32xf32> to vector<4x2x32xf32>
    %7 = vector.extract_strided_slice %6 {offsets = [0, 0, 0], sizes = [1, 2, 32], strides = [1, 1, 1]} : vector<4x2x32xf32> to vector<1x2x32xf32>
    %8 = vector.shape_cast %7 : vector<1x2x32xf32> to vector<2x32xf32>
    %c0_8 = arith.constant 0 : index
    %c0_9 = arith.constant 0 : index
    %c0_10 = arith.constant 0 : index
    %9 = vector.load %arg2[%c0_8, %c0_9, %c0_10] : memref<4x32x32xf32, #tpu.memory_space<vmem>>, vector<1x32x32xf32>
    %10 = vector.shape_cast %9 : vector<1x32x32xf32> to vector<32x32xf32>
    %cst = arith.constant dense<0.000000e+00> : vector<2x32xf32>
    %11 = tpu.matmul %3, %10, %cst {dimension_numbers = #tpu.dot_dimension_numbers<[1], [0], [0], [1], [0, 0, 1, 1], [], []>} : vector<2x32xf32>, vector<32x32xf32>, vector<2x32xf32> -> vector<2x32xf32>
    %12 = arith.addf %8, %11 : vector<2x32xf32>
    %13 = vector.extract_strided_slice %6 {offsets = [1, 0, 0], sizes = [1, 2, 32], strides = [1, 1, 1]} : vector<4x2x32xf32> to vector<1x2x32xf32>
    %14 = vector.shape_cast %13 : vector<1x2x32xf32> to vector<2x32xf32>
    %c1 = arith.constant 1 : index
    %c0_11 = arith.constant 0 : index
    %c0_12 = arith.constant 0 : index
    %15 = vector.load %arg2[%c1, %c0_11, %c0_12] : memref<4x32x32xf32, #tpu.memory_space<vmem>>, vector<1x32x32xf32>
    %16 = vector.shape_cast %15 : vector<1x32x32xf32> to vector<32x32xf32>
    %cst_13 = arith.constant dense<0.000000e+00> : vector<2x32xf32>
    %17 = tpu.matmul %3, %16, %cst_13 {dimension_numbers = #tpu.dot_dimension_numbers<[1], [0], [0], [1], [0, 0, 1, 1], [], []>} : vector<2x32xf32>, vector<32x32xf32>, vector<2x32xf32> -> vector<2x32xf32>
    %18 = arith.addf %14, %17 : vector<2x32xf32>
    %19 = vector.extract_strided_slice %6 {offsets = [2, 0, 0], sizes = [1, 2, 32], strides = [1, 1, 1]} : vector<4x2x32xf32> to vector<1x2x32xf32>
    %20 = vector.shape_cast %19 : vector<1x2x32xf32> to vector<2x32xf32>
    %c2 = arith.constant 2 : index
    %c0_14 = arith.constant 0 : index
    %c0_15 = arith.constant 0 : index
    %21 = vector.load %arg2[%c2, %c0_14, %c0_15] : memref<4x32x32xf32, #tpu.memory_space<vmem>>, vector<1x32x32xf32>
    %22 = vector.shape_cast %21 : vector<1x32x32xf32> to vector<32x32xf32>
    %cst_16 = arith.constant dense<0.000000e+00> : vector<2x32xf32>
    %23 = tpu.matmul %3, %22, %cst_16 {dimension_numbers = #tpu.dot_dimension_numbers<[1], [0], [0], [1], [0, 0, 1, 1], [], []>} : vector<2x32xf32>, vector<32x32xf32>, vector<2x32xf32> -> vector<2x32xf32>
    %24 = arith.addf %20, %23 : vector<2x32xf32>
    %25 = vector.extract_strided_slice %6 {offsets = [3, 0, 0], sizes = [1, 2, 32], strides = [1, 1, 1]} : vector<4x2x32xf32> to vector<1x2x32xf32>
    %26 = vector.shape_cast %25 : vector<1x2x32xf32> to vector<2x32xf32>
    %c3 = arith.constant 3 : index
    %c0_17 = arith.constant 0 : index
    %c0_18 = arith.constant 0 : index
    %27 = vector.load %arg2[%c3, %c0_17, %c0_18] : memref<4x32x32xf32, #tpu.memory_space<vmem>>, vector<1x32x32xf32>
    %28 = vector.shape_cast %27 : vector<1x32x32xf32> to vector<32x32xf32>
    %cst_19 = arith.constant dense<0.000000e+00> : vector<2x32xf32>
    %29 = tpu.matmul %3, %28, %cst_19 {dimension_numbers = #tpu.dot_dimension_numbers<[1], [0], [0], [1], [0, 0, 1, 1], [], []>} : vector<2x32xf32>, vector<32x32xf32>, vector<2x32xf32> -> vector<2x32xf32>
    %30 = arith.addf %26, %29 : vector<2x32xf32>
    %31 = arith.negf %12 : vector<2x32xf32>
    %32 = math.exp %31 : vector<2x32xf32>
    %cst_20 = arith.constant 1.000000e+00 : f32
    %33 = vector.broadcast %cst_20 : f32 to vector<2x32xf32>
    %34 = arith.addf %33, %32 : vector<2x32xf32>
    %35 = arith.divf %33, %34 : vector<2x32xf32>
    %36 = arith.mulf %4, %35 : vector<2x32xf32>
    %37 = arith.negf %18 : vector<2x32xf32>
    %38 = math.exp %37 : vector<2x32xf32>
    %cst_21 = arith.constant 1.000000e+00 : f32
    %39 = vector.broadcast %cst_21 : f32 to vector<2x32xf32>
    %40 = arith.addf %39, %38 : vector<2x32xf32>
    %41 = arith.divf %39, %40 : vector<2x32xf32>
    %42 = math.tanh %24 : vector<2x32xf32>
    %43 = arith.mulf %41, %42 : vector<2x32xf32>
    %44 = arith.addf %36, %43 : vector<2x32xf32>
    %45 = math.tanh %44 : vector<2x32xf32>
    %46 = arith.mulf %30, %45 : vector<2x32xf32>
    %c0_22 = arith.constant 0 : index
    %c0_23 = arith.constant 0 : index
    %47 = vector.load %arg8[%c0_22, %c0_23] : memref<2x32xf32, #tpu.memory_space<vmem>>, vector<2x32xf32>
    tpu.vector_store %arg8[%c0_22, %c0_23], %46 {strides = array<i32>} : memref<2x32xf32, #tpu.memory_space<vmem>>, vector<2x32xf32>,
    %c0_24 = arith.constant 0 : index
    %c0_25 = arith.constant 0 : index
    %48 = vector.load %arg9[%c0_24, %c0_25] : memref<2x32xf32, #tpu.memory_space<vmem>>, vector<2x32xf32>
    tpu.vector_store %arg9[%c0_24, %c0_25], %44 {strides = array<i32>} : memref<2x32xf32, #tpu.memory_space<vmem>>, vector<2x32xf32>,
    %49 = arith.index_cast %arg0 : i32 to index
    %c0_26 = arith.constant 0 : index
    %c0_27 = arith.constant 0 : index
    %50 = vector.load %arg5[%49, %c0_26, %c0_27] : memref<8x2x32xf32, #tpu.memory_space<vmem>>, vector<1x2x32xf32>
    %51 = vector.shape_cast %50 : vector<1x2x32xf32> to vector<2x32xf32>
    %52 = vector.shape_cast %46 : vector<2x32xf32> to vector<1x2x32xf32>
    tpu.vector_store %arg5[%49, %c0_26, %c0_27], %52 {strides = array<i32>} : memref<8x2x32xf32, #tpu.memory_space<vmem>>, vector<1x2x32xf32>,
    %c7_i32 = arith.constant 7 : i32
    %53 = arith.cmpi eq, %arg0, %c7_i32 : i32
    %54 = arith.extui %53 : i1 to i32
    %c0_i32_28 = arith.constant 0 : i32
    %55 = arith.cmpi ne, %54, %c0_i32_28 : i32
    scf.if %55 {
      %c0_29 = arith.constant 0 : index
      %c0_30 = arith.constant 0 : index
      %56 = vector.load %arg6[%c0_29, %c0_30] : memref<2x32xf32, #tpu.memory_space<vmem>>, vector<2x32xf32>
      tpu.vector_store %arg6[%c0_29, %c0_30], %46 {strides = array<i32>} : memref<2x32xf32, #tpu.memory_space<vmem>>, vector<2x32xf32>,
      %c0_31 = arith.constant 0 : index
      %c0_32 = arith.constant 0 : index
      %57 = vector.load %arg7[%c0_31, %c0_32] : memref<2x32xf32, #tpu.memory_space<vmem>>, vector<2x32xf32>
      tpu.vector_store %arg7[%c0_31, %c0_32], %44 {strides = array<i32>} : memref<2x32xf32, #tpu.memory_space<vmem>>, vector<2x32xf32>,
    } else {
    }
    return
  }
  func.func @transform_0(%arg0: i32) -> (i32, i32, i32, i32) {
    %c0_i32 = arith.constant 0 : i32
    %c0_i32_0 = arith.constant 0 : i32
    %c0_i32_1 = arith.constant 0 : i32
    %c0_i32_2 = arith.constant 0 : i32
    return %arg0, %c0_i32, %c0_i32_0, %c0_i32_1 : i32, i32, i32, i32
  }
  func.func @transform_1(%arg0: i32) -> (i32, i32, i32) {
    %c0_i32 = arith.constant 0 : i32
    %c0_i32_0 = arith.constant 0 : i32
    %c0_i32_1 = arith.constant 0 : i32
    %c0_i32_2 = arith.constant 0 : i32
    return %c0_i32, %c0_i32_0, %c0_i32_1 : i32, i32, i32
  }
  func.func @transform_2(%arg0: i32) -> (i32, i32) {
    %c0_i32 = arith.constant 0 : i32
    %c0_i32_0 = arith.constant 0 : i32
    %c0_i32_1 = arith.constant 0 : i32
    return %c0_i32, %c0_i32_0 : i32, i32
  }
  func.func @transform_3(%arg0: i32) -> (i32, i32) {
    %c0_i32 = arith.constant 0 : i32
    %c0_i32_0 = arith.constant 0 : i32
    %c0_i32_1 = arith.constant 0 : i32
    return %c0_i32, %c0_i32_0 : i32, i32
  }
  func.func @transform_4(%arg0: i32) -> (i32, i32, i32) {
    %c0_i32 = arith.constant 0 : i32
    %c0_i32_0 = arith.constant 0 : i32
    %c0_i32_1 = arith.constant 0 : i32
    %c0_i32_2 = arith.constant 0 : i32
    return %c0_i32, %c0_i32_0, %c0_i32_1 : i32, i32, i32
  }
  func.func @transform_5(%arg0: i32) -> (i32, i32) {
    %c0_i32 = arith.constant 0 : i32
    %c0_i32_0 = arith.constant 0 : i32
    %c0_i32_1 = arith.constant 0 : i32
    return %c0_i32, %c0_i32_0 : i32, i32
  }
  func.func @transform_6(%arg0: i32) -> (i32, i32) {
    %c0_i32 = arith.constant 0 : i32
    %c0_i32_0 = arith.constant 0 : i32
    %c0_i32_1 = arith.constant 0 : i32
    return %c0_i32, %c0_i32_0 : i32, i32
  }
}

</mosaic_0001>

<llo_original>
// kernel: lstm_block_forward.4
$region0: #{lstm_block_forward.4}
  #allocation0 [shape = 'u32[]', space=smem, size = 0x4, offset = 0x4, fixed_abs, tag = 'smem constant byte address 0x4 - core index']
  #allocation1 [shape = 'u32[144,128]{1,0:T(1,128)}', space=vmem, size = 0x12000, scoped, tag = 'internal scratch']
  %s0 = inlined_call_operand.vmem [shape: f32[16,16], index: 0, kind: input, shape index: {}]
  %s1 = inlined_call_operand.vmem [shape: f32[16,128], index: 1, kind: input, shape index: {}]
  %s2 = inlined_call_operand.vmem [shape: f32[1,128], index: 2, kind: input, shape index: {}]
  %s3 = inlined_call_operand.vmem [shape: f32[16,128], index: 3, kind: output, shape index: {}]
  %s4 = sld [smem:[#allocation0]]
  $region22: #{lstm_block_forward.4} parent=0
    _
  %s6 = ssub.s32 1, %s4
  %s7 = scalar_select 0, %s6, %s4
  // Predicated region
  $region2: #{lstm_block_forward.4} parent=0 // pred_check
    _
  $region3: #{lstm_block_forward.4} parent=0 // pred_check_branch
    %9 = sbr.rel (0) target = $region5
  $region4: #{lstm_block_forward.4} parent=0 // pred_region
    _
  $region5: #{lstm_block_forward.4} parent=0 // pred_fallthru
    _
  // Predicated region
  $region6: #{lstm_block_forward.4} parent=0 // pred_check
    _
  $region7: #{lstm_block_forward.4} parent=0 // pred_check_branch
    %11 = sbr.rel (0) target = $region9
  $region8: #{lstm_block_forward.4} parent=0 // pred_region
    _
  $region9: #{lstm_block_forward.4} parent=0 // pred_fallthru
    _
  // Predicated region
  $region10: #{lstm_block_forward.4} parent=0 // pred_check
    _
  $region11: #{lstm_block_forward.4} parent=0 // pred_check_branch
    %13 = sbr.rel (0) target = $region13
  $region12: #{lstm_block_forward.4} parent=0 // pred_region
    _
  $region13: #{lstm_block_forward.4} parent=0 // pred_fallthru
    _
  %v14 = vld [vmem:[%s0] sm:$0xff]
  %v15 = vld [vmem:[%s0 + $0x8] sm:$0xff]
  %v16 = vld [vmem:[%s1] sm:$0xff]
  %v17 = vld [vmem:[%s1 + $0x8] sm:$0xff]
  %v18 = vld [vmem:[%s2] sm:$0x1]
  %v20 = vlaneseq
  %v21 = vshrl.u32 %v20, 7
  %v22 = vsub.s32 0, %v21
  %v23 = vrot.slane %v18, %v22
  %vm25 = vcmask 130048
  %v27 = vsel %vm25, %v14, 0
  %v30 = vsel %vm25, %v15, 0
  %32 = vmatprep.subr.mxu0 0.0
  %33 = vmatpush1.msra.mxu0 %v16
  %34 = vmatprep.subr.mxu0 0.0
  %35 = vmatpush1.msra.mxu0 %v17
  %36 = vmatprep.subr.mxu0 0.0
  %37 = vmatpush1.msra.mxu0 0.0
  %38 = vmatprep.subr.mxu0 0.0
  %39 = vmatpush1.msra.mxu0 0.0
  %40 = vmatprep.subr.mxu0 0.0
  %41 = vmatpush1.msra.mxu0 0.0
  %42 = vmatprep.subr.mxu0 0.0
  %43 = vmatpush1.msra.mxu0 0.0
  %44 = vmatprep.subr.mxu0 0.0
  %45 = vmatpush1.msra.mxu0 0.0
  %46 = vmatprep.subr.mxu0 0.0
  %47 = vmatpush1.msra.mxu0 0.0
  %48 = vmatprep.subr.mxu0 0.0
  %49 = vmatpush1.msra.mxu0 0.0
  %50 = vmatprep.subr.mxu0 0.0
  %51 = vmatpush1.msra.mxu0 0.0
  %52 = vmatprep.subr.mxu0 0.0
  %53 = vmatpush1.msra.mxu0 0.0
  %54 = vmatprep.subr.mxu0 0.0
  %55 = vmatpush1.msra.mxu0 0.0
  %56 = vmatprep.subr.mxu0 0.0
  %57 = vmatpush1.msra.mxu0 0.0
  %58 = vmatprep.subr.mxu0 0.0
  %59 = vmatpush1.msra.mxu0 0.0
  %60 = vmatprep.subr.mxu0 0.0
  %61 = vmatpush1.msra.mxu0 0.0
  %62 = vmatprep.subr.mxu0 0.0
  %63 = vmatpush1.msra.mxu0 0.0
  %64 = vmatprep.subr.mxu0 0.0
  %65 = vmatpush1.msra.mxu0 0.0
  %66 = vmatprep.subr.mxu0 0.0
  %67 = vmatpush1.msra.mxu0 0.0
  %68 = vmatprep.subr.mxu0 0.0
  %69 = vmatpush1.msra.mxu0 0.0
  %70 = vmatprep.subr.mxu0 0.0
  %71 = vmatpush1.msra.mxu0 0.0
  %72 = vmatprep.subr.mxu0 0.0
  %73 = vmatpush1.msra.mxu0 0.0
  %74 = vmatprep.subr.mxu0 0.0
  %75 = vmatpush1.msra.mxu0 0.0
  %76 = vmatprep.subr.mxu0 0.0
  %77 = vmatpush1.msra.mxu0 0.0
  %78 = vmatprep.subr.mxu0 0.0
  %79 = vmatpush1.msra.mxu0 0.0
  %80 = vmatprep.subr.mxu0 0.0
  %81 = vmatpush1.msra.mxu0 0.0
  %82 = vmatprep.subr.mxu0 0.0
  %83 = vmatpush1.msra.mxu0 0.0
  %84 = vmatprep.subr.mxu0 0.0
  %85 = vmatpush1.msra.mxu0 0.0
  %86 = vmatprep.subr.mxu0 0.0
  %87 = vmatpush1.msra.mxu0 0.0
  %88 = vmatprep.subr.mxu0 0.0
  %89 = vmatpush1.msra.mxu0 0.0
  %90 = vmatprep.subr.mxu0 0.0
  %91 = vmatpush1.msra.mxu0 0.0
  %92 = vmatprep.subr.mxu0 0.0
  %93 = vmatpush1.msra.mxu0 0.0
  %94 = vmatprep.subr.mxu0 0.0
  %95 = vmatpush1.msra.mxu0 0.0
  %96 = vmatprep.mubr.f32.mxu0 0.0
  %97 = vmatmul.mubr.f32.gmra.mrb[0].mxu0 %v27
  %v98 = vpop.f32.mrb[0].mxu0
  %v99 = vadd.f32 %v23, %v98
  %v100 = vpop.f32.mrb[0].mxu0
  %101 = vmatprep.mubr.f32.mxu0 0.0
  %102 = vmatmul.mubr.f32.gmra.mrb[0].mxu0 %v30
  %v103 = vpop.f32.mrb[0].mxu0
  %v104 = vadd.f32 %v23, %v103
  %v105 = vpop.f32.mrb[0].mxu0
  %106 = vdwg.mxu0
  %107 = vst [vmem:[%s3] sm:$0xff] %v99
  %108 = vst [vmem:[%s3 + $0x8] sm:$0xff] %v104
  // Predicated region
  $region14: #{lstm_block_forward.4} parent=0 // pred_check
    _
  $region15: #{lstm_block_forward.4} parent=0 // pred_check_branch
    %110 = sbr.rel (0) target = $region17
  $region16: #{lstm_block_forward.4} parent=0 // pred_region
    _
  $region17: #{lstm_block_forward.4} parent=0 // pred_fallthru
    _
  // Predicated region
  $region18: #{lstm_block_forward.4} parent=0 // pred_check
    _
  $region19: #{lstm_block_forward.4} parent=0 // pred_check_branch
    %112 = sbr.rel (0) target = $region21
  $region20: #{lstm_block_forward.4} parent=0 // pred_region
    _
  $region21: #{lstm_block_forward.4} parent=0 // pred_fallthru
    _

// kernel: lstm_block_forward.6
$region0: #{lstm_block_forward.6}
  #allocation0 [shape = 'u32[]', space=smem, size = 0x4, offset = 0x4, fixed_abs, tag = 'smem constant byte address 0x4 - core index']
  #allocation1 [shape = 'u32[144,128]{1,0:T(1,128)}', space=vmem, size = 0x12000, scoped, tag = 'internal scratch']
  %s0 = inlined_call_operand.vmem [shape: f32[16,32], index: 0, kind: input, shape index: {}]
  %s1 = inlined_call_operand.vmem [shape: f32[32,128], index: 1, kind: input, shape index: {}]
  %s2 = inlined_call_operand.vmem [shape: f32[1,128], index: 2, kind: input, shape index: {}]
  %s3 = inlined_call_operand.vmem [shape: f32[16,128], index: 3, kind: output, shape index: {}]
  %s4 = sld [smem:[#allocation0]]
  $region22: #{lstm_block_forward.6} parent=0
    _
  %s6 = ssub.s32 1, %s4
  %s7 = scalar_select 0, %s6, %s4
  // Predicated region
  $region2: #{lstm_block_forward.6} parent=0 // pred_check
    _
  $region3: #{lstm_block_forward.6} parent=0 // pred_check_branch
    %9 = sbr.rel (0) target = $region5
  $region4: #{lstm_block_forward.6} parent=0 // pred_region
    _
  $region5: #{lstm_block_forward.6} parent=0 // pred_fallthru
    _
  // Predicated region
  $region6: #{lstm_block_forward.6} parent=0 // pred_check
    _
  $region7: #{lstm_block_forward.6} parent=0 // pred_check_branch
    %11 = sbr.rel (0) target = $region9
  $region8: #{lstm_block_forward.6} parent=0 // pred_region
    _
  $region9: #{lstm_block_forward.6} parent=0 // pred_fallthru
    _
  // Predicated region
  $region10: #{lstm_block_forward.6} parent=0 // pred_check
    _
  $region11: #{lstm_block_forward.6} parent=0 // pred_check_branch
    %13 = sbr.rel (0) target = $region13
  $region12: #{lstm_block_forward.6} parent=0 // pred_region
    _
  $region13: #{lstm_block_forward.6} parent=0 // pred_fallthru
    _
  %v14 = vld [vmem:[%s0] sm:$0xff]
  %v15 = vld [vmem:[%s0 + $0x8] sm:$0xff]
  %v16 = vld [vmem:[%s1] sm:$0xff]
  %v17 = vld [vmem:[%s1 + $0x8] sm:$0xff]
  %v18 = vld [vmem:[%s1 + $0x10] sm:$0xff]
  %v19 = vld [vmem:[%s1 + $0x18] sm:$0xff]
  %v20 = vld [vmem:[%s2] sm:$0x1]
  %v22 = vlaneseq
  %v23 = vshrl.u32 %v22, 7
  %v24 = vsub.s32 0, %v23
  %v25 = vrot.slane %v20, %v24
  %vm27 = vcmask 261120
  %v29 = vsel %vm27, %v14, 0
  %v32 = vsel %vm27, %v15, 0
  %34 = vmatprep.subr.mxu0 0.0
  %35 = vmatpush1.msra.mxu0 %v16
  %36 = vmatprep.subr.mxu0 0.0
  %37 = vmatpush1.msra.mxu0 %v17
  %38 = vmatprep.subr.mxu0 0.0
  %39 = vmatpush1.msra.mxu0 %v18
  %40 = vmatprep.subr.mxu0 0.0
  %41 = vmatpush1.msra.mxu0 %v19
  %42 = vmatprep.subr.mxu0 0.0
  %43 = vmatpush1.msra.mxu0 0.0
  %44 = vmatprep.subr.mxu0 0.0
  %45 = vmatpush1.msra.mxu0 0.0
  %46 = vmatprep.subr.mxu0 0.0
  %47 = vmatpush1.msra.mxu0 0.0
  %48 = vmatprep.subr.mxu0 0.0
  %49 = vmatpush1.msra.mxu0 0.0
  %50 = vmatprep.subr.mxu0 0.0
  %51 = vmatpush1.msra.mxu0 0.0
  %52 = vmatprep.subr.mxu0 0.0
  %53 = vmatpush1.msra.mxu0 0.0
  %54 = vmatprep.subr.mxu0 0.0
  %55 = vmatpush1.msra.mxu0 0.0
  %56 = vmatprep.subr.mxu0 0.0
  %57 = vmatpush1.msra.mxu0 0.0
  %58 = vmatprep.subr.mxu0 0.0
  %59 = vmatpush1.msra.mxu0 0.0
  %60 = vmatprep.subr.mxu0 0.0
  %61 = vmatpush1.msra.mxu0 0.0
  %62 = vmatprep.subr.mxu0 0.0
  %63 = vmatpush1.msra.mxu0 0.0
  %64 = vmatprep.subr.mxu0 0.0
  %65 = vmatpush1.msra.mxu0 0.0
  %66 = vmatprep.subr.mxu0 0.0
  %67 = vmatpush1.msra.mxu0 0.0
  %68 = vmatprep.subr.mxu0 0.0
  %69 = vmatpush1.msra.mxu0 0.0
  %70 = vmatprep.subr.mxu0 0.0
  %71 = vmatpush1.msra.mxu0 0.0
  %72 = vmatprep.subr.mxu0 0.0
  %73 = vmatpush1.msra.mxu0 0.0
  %74 = vmatprep.subr.mxu0 0.0
  %75 = vmatpush1.msra.mxu0 0.0
  %76 = vmatprep.subr.mxu0 0.0
  %77 = vmatpush1.msra.mxu0 0.0
  %78 = vmatprep.subr.mxu0 0.0
  %79 = vmatpush1.msra.mxu0 0.0
  %80 = vmatprep.subr.mxu0 0.0
  %81 = vmatpush1.msra.mxu0 0.0
  %82 = vmatprep.subr.mxu0 0.0
  %83 = vmatpush1.msra.mxu0 0.0
  %84 = vmatprep.subr.mxu0 0.0
  %85 = vmatpush1.msra.mxu0 0.0
  %86 = vmatprep.subr.mxu0 0.0
  %87 = vmatpush1.msra.mxu0 0.0
  %88 = vmatprep.subr.mxu0 0.0
  %89 = vmatpush1.msra.mxu0 0.0
  %90 = vmatprep.subr.mxu0 0.0
  %91 = vmatpush1.msra.mxu0 0.0
  %92 = vmatprep.subr.mxu0 0.0
  %93 = vmatpush1.msra.mxu0 0.0
  %94 = vmatprep.subr.mxu0 0.0
  %95 = vmatpush1.msra.mxu0 0.0
  %96 = vmatprep.subr.mxu0 0.0
  %97 = vmatpush1.msra.mxu0 0.0
  %98 = vmatprep.mubr.f32.mxu0 0.0
  %99 = vmatmul.mubr.f32.gmra.mrb[0].mxu0 %v29
  %v100 = vpop.f32.mrb[0].mxu0
  %v101 = vadd.f32 %v25, %v100
  %v102 = vpop.f32.mrb[0].mxu0
  %103 = vmatprep.mubr.f32.mxu0 0.0
  %104 = vmatmul.mubr.f32.gmra.mrb[0].mxu0 %v32
  %v105 = vpop.f32.mrb[0].mxu0
  %v106 = vadd.f32 %v25, %v105
  %v107 = vpop.f32.mrb[0].mxu0
  %108 = vdwg.mxu0
  %109 = vst [vmem:[%s3] sm:$0xff] %v101
  %110 = vst [vmem:[%s3 + $0x8] sm:$0xff] %v106
  // Predicated region
  $region14: #{lstm_block_forward.6} parent=0 // pred_check
    _
  $region15: #{lstm_block_forward.6} parent=0 // pred_check_branch
    %112 = sbr.rel (0) target = $region17
  $region16: #{lstm_block_forward.6} parent=0 // pred_region
    _
  $region17: #{lstm_block_forward.6} parent=0 // pred_fallthru
    _
  // Predicated region
  $region18: #{lstm_block_forward.6} parent=0 // pred_check
    _
  $region19: #{lstm_block_forward.6} parent=0 // pred_check_branch
    %114 = sbr.rel (0) target = $region21
  $region20: #{lstm_block_forward.6} parent=0 // pred_region
    _
  $region21: #{lstm_block_forward.6} parent=0 // pred_fallthru
    _

// kernel: lstm_block_forward.7
$region0: #{lstm_block_forward.7}
  #allocation0 [shape = 'u32[]', space=smem, size = 0x4, offset = 0x4, fixed_abs, tag = 'smem constant byte address 0x4 - core index']
  #allocation1 [shape = 'u32[144,128]{1,0:T(1,128)}', space=vmem, size = 0x12000, scoped, tag = 'internal scratch']
  #allocation2 [shape = 'f32[2,32]{1,0:T(2,128)}', space=vmem, size = 0x400, scoped, tag = 'scratch operand']
  #allocation3 [shape = 'f32[2,32]{1,0:T(2,128)}', space=vmem, size = 0x400, scoped, tag = 'scratch operand']
  %s0 = inlined_call_operand.vmem [shape: f32[8,4,2,32], index: 0, kind: input, shape index: {}]
  %s1 = inlined_call_operand.vmem [shape: f32[4,32,32], index: 1, kind: input, shape index: {}]
  %s2 = inlined_call_operand.vmem [shape: f32[2,32], index: 2, kind: input, shape index: {}]
  %s3 = inlined_call_operand.vmem [shape: f32[2,32], index: 3, kind: input, shape index: {}]
  %s4 = inlined_call_operand.vmem [shape: f32[8,2,32], index: 4, kind: output, shape index: {0}]
  %s5 = inlined_call_operand.hbm [shape: f32[2,32], index: 5, kind: output, shape index: {1}]
  %s6 = inlined_call_operand.hbm [shape: f32[2,32], index: 6, kind: output, shape index: {2}]
  %7 = xla_tuple %s4, %s5, %s6
  %s8 = sld [smem:[#allocation0]]
  $region73: #{lstm_block_forward.7} parent=0
    _
  %s10 = ssub.s32 1, %s8
  %s11 = scalar_select 0, %s10, %s8
  $region1: #{lstm_block_forward.7} parent=0
    #allocation4 [shape = 'u8[1024]{0}', space=vmem, size = 0x400, scoped, tag = 'output window, operand 1, single buffered']
    #allocation5 [shape = 's32[2]{0}', space=sflag, size = 0x8, scoped, tag = 'scoped memory for lstm_block_forward.7']
    #allocation6 [shape = 'u8[1024]{0}', space=vmem, size = 0x400, scoped, tag = 'output window, operand 2, single buffered']
    #allocation7 [shape = 's32[1]{0}', space=sflag, size = 0x4, scoped, tag = 'scoped memory for lstm_block_forward.7']
    %12 = vsyncpa [#allocation5], 0
    %13 = vsyncpa [#allocation7], 0
    loop: start=0, step=1, limit=10
    $region2: #{lstm_block_forward.7} parent=1 // loop_pre_header
      _
    $region3: #{lstm_block_forward.7} parent=1 // loop_header
      %s15 = sphi 0, %s19
      %p16 = scmp.ge.s32.totalorder %s15, 10
      %s25 = sphi 0, %s27
      %s28 = sphi 0, %s25
      %s29 = sphi 0, %s28
      %s45 = sphi 0, %s29
      %s49 = sphi 0, %s49
      %s51 = sphi 0, %s49
      %s52 = sphi 0, %s51
      %s66 = sphi 0, %s52
      %s70 = sphi 0, %s70
      %s72 = sphi 0, %s70
      %s73 = sphi 0, %s72
      %s87 = sphi 0, %s73
      %s91 = sphi 0, %s91
      %s93 = sphi 0, %s91
      %s94 = sphi 0, %s93
      %s108 = sphi 0, %s94
      %s112 = sphi 0, %s112
      %s114 = sphi 0, %s112
      %s115 = sphi 0, %s114
      %s129 = sphi 0, %s115
      %s133 = sphi 0, %s133
      %s135 = sphi 0, %s133
      %s136 = sphi 0, %s135
      %s150 = sphi 0, %s136
      %s154 = sphi 0, %s154
      %s156 = sphi 0, %s154
      %s157 = sphi 0, %s156
      %s171 = sphi 0, %s157
    $region4: #{lstm_block_forward.7} parent=1 // loop_header_branch
      %18 = sbr.rel (%p16) target = $region8
    $region5: #{lstm_block_forward.7} parent=1 // loop_body
      %s20 = ssub.s32 %s15, 1
      %s21 = ssub.s32 %s15, 2
      %s22 = sadd.s32 %s15, 1
      %s23 = ssub.s32 %s15, %s22
      %p24 = scmp.eq.s32.totalorder %s23, 0
      %s26 = sadd.s32 %s25, 1
      %s27 = scalar_select %p24, %s25, %s26
      %p30 = pneg %p24
      %p31 = scmp.eq.s32.totalorder %s15, 7
      %p32 = por %p30, %p31
      %p33 = scmp.ne.s32.totalorder %s25, %s28
      %p34 = scmp.eq.s32.totalorder %s15, 0
      %p35 = por %p33, %p34
      %p36 = scmp.ne.s32.totalorder %s25, %s28
      %p37 = scmp.eq.s32.totalorder %s20, 7
      %p38 = por %p36, %p37
      %p39 = scmp.ne.s32.totalorder %s28, %s29
      %p40 = scmp.eq.s32.totalorder %s20, 0
      %p41 = por %p39, %p40
      %p42 = scmp.ne.s32.totalorder %s28, %s29
      %p43 = scmp.eq.s32.totalorder %s21, 7
      %p44 = por %p42, %p43
      %p46 = scmp.ne.s32.totalorder %s29, %s45
      %p47 = scmp.eq.s32.totalorder %s21, 0
      %p48 = por %p46, %p47
      %s50 = sadd.s32 %s49, 1
      %p53 = scmp.eq.s32.totalorder %s15, 7
      %p54 = scmp.ne.s32.totalorder %s49, %s51
      %p55 = scmp.eq.s32.totalorder %s15, 0
      %p56 = por %p54, %p55
      %p57 = scmp.ne.s32.totalorder %s49, %s51
      %p58 = scmp.eq.s32.totalorder %s20, 7
      %p59 = por %p57, %p58
      %p60 = scmp.ne.s32.totalorder %s51, %s52
      %p61 = scmp.eq.s32.totalorder %s20, 0
      %p62 = por %p60, %p61
      %p63 = scmp.ne.s32.totalorder %s51, %s52
      %p64 = scmp.eq.s32.totalorder %s21, 7
      %p65 = por %p63, %p64
      %p67 = scmp.ne.s32.totalorder %s52, %s66
      %p68 = scmp.eq.s32.totalorder %s21, 0
      %p69 = por %p67, %p68
      %s71 = sadd.s32 %s70, 1
      %p74 = scmp.eq.s32.totalorder %s15, 7
      %p75 = scmp.ne.s32.totalorder %s70, %s72
      %p76 = scmp.eq.s32.totalorder %s15, 0
      %p77 = por %p75, %p76
      %p78 = scmp.ne.s32.totalorder %s70, %s72
      %p79 = scmp.eq.s32.totalorder %s20, 7
      %p80 = por %p78, %p79
      %p81 = scmp.ne.s32.totalorder %s72, %s73
      %p82 = scmp.eq.s32.totalorder %s20, 0
      %p83 = por %p81, %p82
      %p84 = scmp.ne.s32.totalorder %s72, %s73
      %p85 = scmp.eq.s32.totalorder %s21, 7
      %p86 = por %p84, %p85
      %p88 = scmp.ne.s32.totalorder %s73, %s87
      %p89 = scmp.eq.s32.totalorder %s21, 0
      %p90 = por %p88, %p89
      %s92 = sadd.s32 %s91, 1
      %p95 = scmp.eq.s32.totalorder %s15, 7
      %p96 = scmp.ne.s32.totalorder %s91, %s93
      %p97 = scmp.eq.s32.totalorder %s15, 0
      %p98 = por %p96, %p97
      %p99 = scmp.ne.s32.totalorder %s91, %s93
      %p100 = scmp.eq.s32.totalorder %s20, 7
      %p101 = por %p99, %p100
      %p102 = scmp.ne.s32.totalorder %s93, %s94
      %p103 = scmp.eq.s32.totalorder %s20, 0
      %p104 = por %p102, %p103
      %p105 = scmp.ne.s32.totalorder %s93, %s94
      %p106 = scmp.eq.s32.totalorder %s21, 7
      %p107 = por %p105, %p106
      %p109 = scmp.ne.s32.totalorder %s94, %s108
      %p110 = scmp.eq.s32.totalorder %s21, 0
      %p111 = por %p109, %p110
      %s113 = sadd.s32 %s112, 1
      %p116 = scmp.eq.s32.totalorder %s15, 7
      %p117 = scmp.ne.s32.totalorder %s112, %s114
      %p118 = scmp.eq.s32.totalorder %s15, 0
      %p119 = por %p117, %p118
      %p120 = scmp.ne.s32.totalorder %s112, %s114
      %p121 = scmp.eq.s32.totalorder %s20, 7
      %p122 = por %p120, %p121
      %p123 = scmp.ne.s32.totalorder %s114, %s115
      %p124 = scmp.eq.s32.totalorder %s20, 0
      %p125 = por %p123, %p124
      %p126 = scmp.ne.s32.totalorder %s114, %s115
      %p127 = scmp.eq.s32.totalorder %s21, 7
      %p128 = por %p126, %p127
      %p130 = scmp.ne.s32.totalorder %s115, %s129
      %p131 = scmp.eq.s32.totalorder %s21, 0
      %p132 = por %p130, %p131
      %s134 = sadd.s32 %s133, 1
      %p137 = scmp.eq.s32.totalorder %s15, 7
      %p138 = scmp.ne.s32.totalorder %s133, %s135
      %p139 = scmp.eq.s32.totalorder %s15, 0
      %p140 = por %p138, %p139
      %p141 = scmp.ne.s32.totalorder %s133, %s135
      %p142 = scmp.eq.s32.totalorder %s20, 7
      %p143 = por %p141, %p142
      %p144 = scmp.ne.s32.totalorder %s135, %s136
      %p145 = scmp.eq.s32.totalorder %s20, 0
      %p146 = por %p144, %p145
      %p147 = scmp.ne.s32.totalorder %s135, %s136
      %p148 = scmp.eq.s32.totalorder %s21, 7
      %p149 = por %p147, %p148
      %p151 = scmp.ne.s32.totalorder %s136, %s150
      %p152 = scmp.eq.s32.totalorder %s21, 0
      %p153 = por %p151, %p152
      %s155 = sadd.s32 %s154, 1
      %p158 = scmp.eq.s32.totalorder %s15, 7
      %p159 = scmp.ne.s32.totalorder %s154, %s156
      %p160 = scmp.eq.s32.totalorder %s15, 0
      %p161 = por %p159, %p160
      %p162 = scmp.ne.s32.totalorder %s154, %s156
      %p163 = scmp.eq.s32.totalorder %s20, 7
      %p164 = por %p162, %p163
      %p165 = scmp.ne.s32.totalorder %s156, %s157
      %p166 = scmp.eq.s32.totalorder %s20, 0
      %p167 = por %p165, %p166
      %p168 = scmp.ne.s32.totalorder %s156, %s157
      %p169 = scmp.eq.s32.totalorder %s21, 7
      %p170 = por %p168, %p169
      %p172 = scmp.ne.s32.totalorder %s157, %s171
      %p173 = scmp.eq.s32.totalorder %s21, 0
      %p174 = por %p172, %p173
      %p175 = scmp.le.s32.totalorder 1, %s15
      %p176 = scmp.lt.s32.totalorder %s15, 9
      %p177 = pnand %p175, %p176
      %p178 = pneg %p177
      // Predicated region
      $region9: #{lstm_block_forward.7} parent=5 // pred_check
        _
      $region10: #{lstm_block_forward.7} parent=5 // pred_check_branch
        %180 = sbr.rel (%p177) target = $region12
      $region11: #{lstm_block_forward.7} parent=5 // pred_region
        %s181 = ssub.s32 %s15, 1
        // Predicated region
        $region13: #{lstm_block_forward.7} parent=11 // pred_check
          %p182 = pneg %p62
        $region14: #{lstm_block_forward.7} parent=11 // pred_check_branch
          %184 = sbr.rel (%p182) target = $region16
        $region15: #{lstm_block_forward.7} parent=11 // pred_region
          _
        $region16: #{lstm_block_forward.7} parent=11 // pred_fallthru
          _
        // Predicated region
        $region17: #{lstm_block_forward.7} parent=11 // pred_check
          %p185 = pneg %p83
        $region18: #{lstm_block_forward.7} parent=11 // pred_check_branch
          %187 = sbr.rel (%p185) target = $region20
        $region19: #{lstm_block_forward.7} parent=11 // pred_region
          _
        $region20: #{lstm_block_forward.7} parent=11 // pred_fallthru
          _
        // Predicated region
        $region21: #{lstm_block_forward.7} parent=11 // pred_check
          %p188 = pneg %p104
        $region22: #{lstm_block_forward.7} parent=11 // pred_check_branch
          %190 = sbr.rel (%p188) target = $region24
        $region23: #{lstm_block_forward.7} parent=11 // pred_region
          _
        $region24: #{lstm_block_forward.7} parent=11 // pred_fallthru
          _
      $region12: #{lstm_block_forward.7} parent=5 // pred_fallthru
        _
      %p191 = scmp.lt.s32.totalorder %s15, 8
      // Predicated region
      $region25: #{lstm_block_forward.7} parent=5 // pred_check
        %p192 = pneg %p191
      $region26: #{lstm_block_forward.7} parent=5 // pred_check_branch
        %194 = sbr.rel (%p192) target = $region28
      $region27: #{lstm_block_forward.7} parent=5 // pred_region
        // Predicated region
        $region29: #{lstm_block_forward.7} parent=27 // pred_check
          %p195 = pneg %p35
        $region30: #{lstm_block_forward.7} parent=27 // pred_check_branch
          %197 = sbr.rel (%p195) target = $region32
        $region31: #{lstm_block_forward.7} parent=27 // pred_region
          %p198 = scmp.lt.s32.totalorder %s15, 7
          %s199 = scalar_select %p198, %s15, 7
          %s200 = smul.addr %s199, 4
          %s201 = smul.addr %s200, 2
          %s202 = scalar_lea.vmem %s0, %s201
        $region32: #{lstm_block_forward.7} parent=27 // pred_fallthru
          _
      $region28: #{lstm_block_forward.7} parent=5 // pred_fallthru
        _
      %p203 = scmp.le.s32.totalorder 1, %s15
      %p204 = scmp.lt.s32.totalorder %s15, 9
      %p205 = pnand %p203, %p204
      %p206 = pneg %p205
      // Predicated region
      $region33: #{lstm_block_forward.7} parent=5 // pred_check
        _
      $region34: #{lstm_block_forward.7} parent=5 // pred_check_branch
        %208 = sbr.rel (%p205) target = $region36
      $region35: #{lstm_block_forward.7} parent=5 // pred_region
        %s209 = ssub.s32 %s15, 1
        %p210 = scmp.lt.s32.totalorder %s20, 7
        %s211 = scalar_select %p210, %s20, 7
        %s212 = smul.addr %s211, 4
        %s213 = smul.addr %s212, 2
        %s214 = scalar_lea.vmem %s0, %s213
        %p215 = pneg %p41
        %p216 = pneg %p38
        %p217 = pneg %p62
        %p218 = pneg %p59
        %p219 = pneg %p83
        %p220 = pneg %p80
        %p221 = pneg %p104
        %p222 = pneg %p101
        %p223 = pneg %p125
        %p224 = pneg %p122
        %p225 = pneg %p146
        %p226 = pneg %p143
        %p227 = pneg %p167
        %p228 = pneg %p164
        %p229 = scmp.lt.s32.totalorder %s20, 7
        %s230 = scalar_select %p229, %s20, 7
        %s231 = smul.addr %s230, 4
        %s232 = smul.addr %s231, 2
        %s233 = scalar_lea.vmem %s0, %s232
        %p234 = scmp.eq.s32.totalorder %s20, 0
        // Predicated region
        $region37: #{lstm_block_forward.7} parent=35 // pred_check
          %p235 = pneg %p234
        $region38: #{lstm_block_forward.7} parent=35 // pred_check_branch
          %237 = sbr.rel (%p235) target = $region40
        $region39: #{lstm_block_forward.7} parent=35 // pred_region
          %v238 = vld [vmem:[%s2] sm:$0x3]
          %vm239 = vcmask 254976
          %240 = vst.msk [vmem:[#allocation2] sm:$0x3] %vm239, %v238
          %v241 = vld [vmem:[%s3] sm:$0x3]
          %242 = vst.msk [vmem:[#allocation3] sm:$0x3] %vm239, %v241
        $region40: #{lstm_block_forward.7} parent=35 // pred_fallthru
          _
        %v243 = vld [vmem:[#allocation2] sm:$0x3]
        %v244 = vld [vmem:[#allocation3] sm:$0x3]
        %v245 = vld [vmem:[%s233] sm:$0x3]
        %v246 = vld [vmem:[%s233 + $0x2] sm:$0x3]
        %v247 = vld [vmem:[%s233 + $0x4] sm:$0x3]
        %v248 = vld [vmem:[%s233 + $0x6] sm:$0x3]
        %v249 = vld [vmem:[%s1] sm:$0xff]
        %v250 = vld [vmem:[%s1 + $0x8] sm:$0xff]
        %v251 = vld [vmem:[%s1 + $0x10] sm:$0xff]
        %v252 = vld [vmem:[%s1 + $0x18] sm:$0xff]
        %vm253 = vcmask 261120
        %v255 = vsel %vm253, %v243, 0
        %257 = vmatprep.subr.mxu0 0.0
        %258 = vmatpush1.msra.mxu0 %v249
        %259 = vmatprep.subr.mxu0 0.0
        %260 = vmatpush1.msra.mxu0 %v250
        %261 = vmatprep.subr.mxu0 0.0
        %262 = vmatpush1.msra.mxu0 %v251
        %263 = vmatprep.subr.mxu0 0.0
        %264 = vmatpush1.msra.mxu0 %v252
        %265 = vmatprep.subr.mxu0 0.0
        %266 = vmatpush1.msra.mxu0 0.0
        %267 = vmatprep.subr.mxu0 0.0
        %268 = vmatpush1.msra.mxu0 0.0
        %269 = vmatprep.subr.mxu0 0.0
        %270 = vmatpush1.msra.mxu0 0.0
        %271 = vmatprep.subr.mxu0 0.0
        %272 = vmatpush1.msra.mxu0 0.0
        %273 = vmatprep.subr.mxu0 0.0
        %274 = vmatpush1.msra.mxu0 0.0
        %275 = vmatprep.subr.mxu0 0.0
        %276 = vmatpush1.msra.mxu0 0.0
        %277 = vmatprep.subr.mxu0 0.0
        %278 = vmatpush1.msra.mxu0 0.0
        %279 = vmatprep.subr.mxu0 0.0
        %280 = vmatpush1.msra.mxu0 0.0
        %281 = vmatprep.subr.mxu0 0.0
        %282 = vmatpush1.msra.mxu0 0.0
        %283 = vmatprep.subr.mxu0 0.0
        %284 = vmatpush1.msra.mxu0 0.0
        %285 = vmatprep.subr.mxu0 0.0
        %286 = vmatpush1.msra.mxu0 0.0
        %287 = vmatprep.subr.mxu0 0.0
        %288 = vmatpush1.msra.mxu0 0.0
        %289 = vmatprep.subr.mxu0 0.0
        %290 = vmatpush1.msra.mxu0 0.0
        %291 = vmatprep.subr.mxu0 0.0
        %292 = vmatpush1.msra.mxu0 0.0
        %293 = vmatprep.subr.mxu0 0.0
        %294 = vmatpush1.msra.mxu0 0.0
        %295 = vmatprep.subr.mxu0 0.0
        %296 = vmatpush1.msra.mxu0 0.0
        %297 = vmatprep.subr.mxu0 0.0
        %298 = vmatpush1.msra.mxu0 0.0
        %299 = vmatprep.subr.mxu0 0.0
        %300 = vmatpush1.msra.mxu0 0.0
        %301 = vmatprep.subr.mxu0 0.0
        %302 = vmatpush1.msra.mxu0 0.0
        %303 = vmatprep.subr.mxu0 0.0
        %304 = vmatpush1.msra.mxu0 0.0
        %305 = vmatprep.subr.mxu0 0.0
        %306 = vmatpush1.msra.mxu0 0.0
        %307 = vmatprep.subr.mxu0 0.0
        %308 = vmatpush1.msra.mxu0 0.0
        %309 = vmatprep.subr.mxu0 0.0
        %310 = vmatpush1.msra.mxu0 0.0
        %311 = vmatprep.subr.mxu0 0.0
        %312 = vmatpush1.msra.mxu0 0.0
        %313 = vmatprep.subr.mxu0 0.0
        %314 = vmatpush1.msra.mxu0 0.0
        %315 = vmatprep.subr.mxu0 0.0
        %316 = vmatpush1.msra.mxu0 0.0
        %317 = vmatprep.subr.mxu0 0.0
        %318 = vmatpush1.msra.mxu0 0.0
        %319 = vmatprep.subr.mxu0 0.0
        %320 = vmatpush1.msra.mxu0 0.0
        %321 = vmatprep.mubr.f32.mxu0 0.0
        %322 = vmatmul.mubr.f32.gmra.mrb[0].mxu0 %v255
        %v323 = vpop.f32.mrb[0].mxu0
        %v324 = vadd.f32 0.0, %v323
        %v325 = vpop.f32.mrb[0].mxu0
        %326 = vdwg.mxu0
        %v327 = vadd.f32 %v245, %v324
        %s328 = scalar_lea.vmem %s1, 32
        %v329 = vld [vmem:[%s328] sm:$0xff]
        %v330 = vld [vmem:[%s328 + $0x8] sm:$0xff]
        %v331 = vld [vmem:[%s328 + $0x10] sm:$0xff]
        %v332 = vld [vmem:[%s328 + $0x18] sm:$0xff]
        %333 = vmatprep.subr.mxu0 0.0
        %334 = vmatpush1.msra.mxu0 %v329
        %335 = vmatprep.subr.mxu0 0.0
        %336 = vmatpush1.msra.mxu0 %v330
        %337 = vmatprep.subr.mxu0 0.0
        %338 = vmatpush1.msra.mxu0 %v331
        %339 = vmatprep.subr.mxu0 0.0
        %340 = vmatpush1.msra.mxu0 %v332
        %341 = vmatprep.subr.mxu0 0.0
        %342 = vmatpush1.msra.mxu0 0.0
        %343 = vmatprep.subr.mxu0 0.0
        %344 = vmatpush1.msra.mxu0 0.0
        %345 = vmatprep.subr.mxu0 0.0
        %346 = vmatpush1.msra.mxu0 0.0
        %347 = vmatprep.subr.mxu0 0.0
        %348 = vmatpush1.msra.mxu0 0.0
        %349 = vmatprep.subr.mxu0 0.0
        %350 = vmatpush1.msra.mxu0 0.0
        %351 = vmatprep.subr.mxu0 0.0
        %352 = vmatpush1.msra.mxu0 0.0
        %353 = vmatprep.subr.mxu0 0.0
        %354 = vmatpush1.msra.mxu0 0.0
        %355 = vmatprep.subr.mxu0 0.0
        %356 = vmatpush1.msra.mxu0 0.0
        %357 = vmatprep.subr.mxu0 0.0
        %358 = vmatpush1.msra.mxu0 0.0
        %359 = vmatprep.subr.mxu0 0.0
        %360 = vmatpush1.msra.mxu0 0.0
        %361 = vmatprep.subr.mxu0 0.0
        %362 = vmatpush1.msra.mxu0 0.0
        %363 = vmatprep.subr.mxu0 0.0
        %364 = vmatpush1.msra.mxu0 0.0
        %365 = vmatprep.subr.mxu0 0.0
        %366 = vmatpush1.msra.mxu0 0.0
        %367 = vmatprep.subr.mxu0 0.0
        %368 = vmatpush1.msra.mxu0 0.0
        %369 = vmatprep.subr.mxu0 0.0
        %370 = vmatpush1.msra.mxu0 0.0
        %371 = vmatprep.subr.mxu0 0.0
        %372 = vmatpush1.msra.mxu0 0.0
        %373 = vmatprep.subr.mxu0 0.0
        %374 = vmatpush1.msra.mxu0 0.0
        %375 = vmatprep.subr.mxu0 0.0
        %376 = vmatpush1.msra.mxu0 0.0
        %377 = vmatprep.subr.mxu0 0.0
        %378 = vmatpush1.msra.mxu0 0.0
        %379 = vmatprep.subr.mxu0 0.0
        %380 = vmatpush1.msra.mxu0 0.0
        %381 = vmatprep.subr.mxu0 0.0
        %382 = vmatpush1.msra.mxu0 0.0
        %383 = vmatprep.subr.mxu0 0.0
        %384 = vmatpush1.msra.mxu0 0.0
        %385 = vmatprep.subr.mxu0 0.0
        %386 = vmatpush1.msra.mxu0 0.0
        %387 = vmatprep.subr.mxu0 0.0
        %388 = vmatpush1.msra.mxu0 0.0
        %389 = vmatprep.subr.mxu0 0.0
        %390 = vmatpush1.msra.mxu0 0.0
        %391 = vmatprep.subr.mxu0 0.0
        %392 = vmatpush1.msra.mxu0 0.0
        %393 = vmatprep.subr.mxu0 0.0
        %394 = vmatpush1.msra.mxu0 0.0
        %395 = vmatprep.subr.mxu0 0.0
        %396 = vmatpush1.msra.mxu0 0.0
        %397 = vmatprep.mubr.f32.mxu0 0.0
        %398 = vmatmul.mubr.f32.gmra.mrb[0].mxu0 %v255
        %v399 = vpop.f32.mrb[0].mxu0
        %v400 = vadd.f32 0.0, %v399
        %v401 = vpop.f32.mrb[0].mxu0
        %402 = vdwg.mxu0
        %v403 = vadd.f32 %v246, %v400
        %s404 = scalar_lea.vmem %s1, 64
        %v405 = vld [vmem:[%s404] sm:$0xff]
        %v406 = vld [vmem:[%s404 + $0x8] sm:$0xff]
        %v407 = vld [vmem:[%s404 + $0x10] sm:$0xff]
        %v408 = vld [vmem:[%s404 + $0x18] sm:$0xff]
        %409 = vmatprep.subr.mxu0 0.0
        %410 = vmatpush1.msra.mxu0 %v405
        %411 = vmatprep.subr.mxu0 0.0
        %412 = vmatpush1.msra.mxu0 %v406
        %413 = vmatprep.subr.mxu0 0.0
        %414 = vmatpush1.msra.mxu0 %v407
        %415 = vmatprep.subr.mxu0 0.0
        %416 = vmatpush1.msra.mxu0 %v408
        %417 = vmatprep.subr.mxu0 0.0
        %418 = vmatpush1.msra.mxu0 0.0
        %419 = vmatprep.subr.mxu0 0.0
        %420 = vmatpush1.msra.mxu0 0.0
        %421 = vmatprep.subr.mxu0 0.0
        %422 = vmatpush1.msra.mxu0 0.0
        %423 = vmatprep.subr.mxu0 0.0
        %424 = vmatpush1.msra.mxu0 0.0
        %425 = vmatprep.subr.mxu0 0.0
        %426 = vmatpush1.msra.mxu0 0.0
        %427 = vmatprep.subr.mxu0 0.0
        %428 = vmatpush1.msra.mxu0 0.0
        %429 = vmatprep.subr.mxu0 0.0
        %430 = vmatpush1.msra.mxu0 0.0
        %431 = vmatprep.subr.mxu0 0.0
        %432 = vmatpush1.msra.mxu0 0.0
        %433 = vmatprep.subr.mxu0 0.0
        %434 = vmatpush1.msra.mxu0 0.0
        %435 = vmatprep.subr.mxu0 0.0
        %436 = vmatpush1.msra.mxu0 0.0
        %437 = vmatprep.subr.mxu0 0.0
        %438 = vmatpush1.msra.mxu0 0.0
        %439 = vmatprep.subr.mxu0 0.0
        %440 = vmatpush1.msra.mxu0 0.0
        %441 = vmatprep.subr.mxu0 0.0
        %442 = vmatpush1.msra.mxu0 0.0
        %443 = vmatprep.subr.mxu0 0.0
        %444 = vmatpush1.msra.mxu0 0.0
        %445 = vmatprep.subr.mxu0 0.0
        %446 = vmatpush1.msra.mxu0 0.0
        %447 = vmatprep.subr.mxu0 0.0
        %448 = vmatpush1.msra.mxu0 0.0
        %449 = vmatprep.subr.mxu0 0.0
        %450 = vmatpush1.msra.mxu0 0.0
        %451 = vmatprep.subr.mxu0 0.0
        %452 = vmatpush1.msra.mxu0 0.0
        %453 = vmatprep.subr.mxu0 0.0
        %454 = vmatpush1.msra.mxu0 0.0
        %455 = vmatprep.subr.mxu0 0.0
        %456 = vmatpush1.msra.mxu0 0.0
        %457 = vmatprep.subr.mxu0 0.0
        %458 = vmatpush1.msra.mxu0 0.0
        %459 = vmatprep.subr.mxu0 0.0
        %460 = vmatpush1.msra.mxu0 0.0
        %461 = vmatprep.subr.mxu0 0.0
        %462 = vmatpush1.msra.mxu0 0.0
        %463 = vmatprep.subr.mxu0 0.0
        %464 = vmatpush1.msra.mxu0 0.0
        %465 = vmatprep.subr.mxu0 0.0
        %466 = vmatpush1.msra.mxu0 0.0
        %467 = vmatprep.subr.mxu0 0.0
        %468 = vmatpush1.msra.mxu0 0.0
        %469 = vmatprep.subr.mxu0 0.0
        %470 = vmatpush1.msra.mxu0 0.0
        %471 = vmatprep.subr.mxu0 0.0
        %472 = vmatpush1.msra.mxu0 0.0
        %473 = vmatprep.mubr.f32.mxu0 0.0
        %474 = vmatmul.mubr.f32.gmra.mrb[0].mxu0 %v255
        %v475 = vpop.f32.mrb[0].mxu0
        %v476 = vadd.f32 0.0, %v475
        %v477 = vpop.f32.mrb[0].mxu0
        %478 = vdwg.mxu0
        %v479 = vadd.f32 %v247, %v476
        %s480 = scalar_lea.vmem %s1, 96
        %v481 = vld [vmem:[%s480] sm:$0xff]
        %v482 = vld [vmem:[%s480 + $0x8] sm:$0xff]
        %v483 = vld [vmem:[%s480 + $0x10] sm:$0xff]
        %v484 = vld [vmem:[%s480 + $0x18] sm:$0xff]
        %485 = vmatprep.subr.mxu0 0.0
        %486 = vmatpush1.msra.mxu0 %v481
        %487 = vmatprep.subr.mxu0 0.0
        %488 = vmatpush1.msra.mxu0 %v482
        %489 = vmatprep.subr.mxu0 0.0
        %490 = vmatpush1.msra.mxu0 %v483
        %491 = vmatprep.subr.mxu0 0.0
        %492 = vmatpush1.msra.mxu0 %v484
        %493 = vmatprep.subr.mxu0 0.0
        %494 = vmatpush1.msra.mxu0 0.0
        %495 = vmatprep.subr.mxu0 0.0
        %496 = vmatpush1.msra.mxu0 0.0
        %497 = vmatprep.subr.mxu0 0.0
        %498 = vmatpush1.msra.mxu0 0.0
        %499 = vmatprep.subr.mxu0 0.0
        %500 = vmatpush1.msra.mxu0 0.0
        %501 = vmatprep.subr.mxu0 0.0
        %502 = vmatpush1.msra.mxu0 0.0
        %503 = vmatprep.subr.mxu0 0.0
        %504 = vmatpush1.msra.mxu0 0.0
        %505 = vmatprep.subr.mxu0 0.0
        %506 = vmatpush1.msra.mxu0 0.0
        %507 = vmatprep.subr.mxu0 0.0
        %508 = vmatpush1.msra.mxu0 0.0
        %509 = vmatprep.subr.mxu0 0.0
        %510 = vmatpush1.msra.mxu0 0.0
        %511 = vmatprep.subr.mxu0 0.0
        %512 = vmatpush1.msra.mxu0 0.0
        %513 = vmatprep.subr.mxu0 0.0
        %514 = vmatpush1.msra.mxu0 0.0
        %515 = vmatprep.subr.mxu0 0.0
        %516 = vmatpush1.msra.mxu0 0.0
        %517 = vmatprep.subr.mxu0 0.0
        %518 = vmatpush1.msra.mxu0 0.0
        %519 = vmatprep.subr.mxu0 0.0
        %520 = vmatpush1.msra.mxu0 0.0
        %521 = vmatprep.subr.mxu0 0.0
        %522 = vmatpush1.msra.mxu0 0.0
        %523 = vmatprep.subr.mxu0 0.0
        %524 = vmatpush1.msra.mxu0 0.0
        %525 = vmatprep.subr.mxu0 0.0
        %526 = vmatpush1.msra.mxu0 0.0
        %527 = vmatprep.subr.mxu0 0.0
        %528 = vmatpush1.msra.mxu0 0.0
        %529 = vmatprep.subr.mxu0 0.0
        %530 = vmatpush1.msra.mxu0 0.0
        %531 = vmatprep.subr.mxu0 0.0
        %532 = vmatpush1.msra.mxu0 0.0
        %533 = vmatprep.subr.mxu0 0.0
        %534 = vmatpush1.msra.mxu0 0.0
        %535 = vmatprep.subr.mxu0 0.0
        %536 = vmatpush1.msra.mxu0 0.0
        %537 = vmatprep.subr.mxu0 0.0
        %538 = vmatpush1.msra.mxu0 0.0
        %539 = vmatprep.subr.mxu0 0.0
        %540 = vmatpush1.msra.mxu0 0.0
        %541 = vmatprep.subr.mxu0 0.0
        %542 = vmatpush1.msra.mxu0 0.0
        %543 = vmatprep.subr.mxu0 0.0
        %544 = vmatpush1.msra.mxu0 0.0
        %545 = vmatprep.subr.mxu0 0.0
        %546 = vmatpush1.msra.mxu0 0.0
        %547 = vmatprep.subr.mxu0 0.0
        %548 = vmatpush1.msra.mxu0 0.0
        %549 = vmatprep.mubr.f32.mxu0 0.0
        %550 = vmatmul.mubr.f32.gmra.mrb[0].mxu0 %v255
        %v551 = vpop.f32.mrb[0].mxu0
        %v552 = vadd.f32 0.0, %v551
        %v553 = vpop.f32.mrb[0].mxu0
        %554 = vdwg.mxu0
        %v555 = vadd.f32 %v248, %v552
        %v556 = vxor.u32 %v327, 2147483648
        %v557 = vmul.f32 %v556, 1.442695
        %v558 = vpow.pop %v557
        %v559 = vadd.f32 %v558, 1.0
        %v560 = vrcp.pop %v559
        %v561 = vmul.f32 1.0, %v560
        %v562 = vmul.f32 %v244, %v561
        %v563 = vxor.u32 %v403, 2147483648
        %v564 = vmul.f32 %v563, 1.442695
        %v565 = vpow.pop %v564
        %v566 = vadd.f32 %v565, 1.0
        %v567 = vrcp.pop %v566
        %v568 = vmul.f32 1.0, %v567
        %v569 = vtanh.pop %v479
        %v570 = vmul.f32 %v568, %v569
        %v571 = vadd.f32 %v562, %v570
        %v572 = vtanh.pop %v571
        %v573 = vmul.f32 %v555, %v572
        %vm574 = vcmask 254976
        %575 = vst.msk [vmem:[#allocation2] sm:$0x3] %vm574, %v573
        %576 = vst.msk [vmem:[#allocation3] sm:$0x3] %vm574, %v571
        %s577 = smul.u32 %s20, 2
        %s578 = scalar_lea.vmem %s4, %s577
        %579 = vst.msk [vmem:[%s578] sm:$0x3] %vm574, %v573
        %p580 = scmp.eq.s32.totalorder %s20, 7
        // Predicated region
        $region41: #{lstm_block_forward.7} parent=35 // pred_check
          %p581 = pneg %p580
        $region42: #{lstm_block_forward.7} parent=35 // pred_check_branch
          %583 = sbr.rel (%p581) target = $region44
        $region43: #{lstm_block_forward.7} parent=35 // pred_region
          %584 = vst.msk [vmem:[#allocation4] sm:$0x3] %vm574, %v573
          %585 = vst.msk [vmem:[#allocation6] sm:$0x3] %vm574, %v571
        $region44: #{lstm_block_forward.7} parent=35 // pred_fallthru
          _
        // Predicated region
        $region45: #{lstm_block_forward.7} parent=35 // pred_check
          %p586 = pneg %p122
        $region46: #{lstm_block_forward.7} parent=35 // pred_check_branch
          %588 = sbr.rel (%p586) target = $region48
        $region47: #{lstm_block_forward.7} parent=35 // pred_region
          _
        $region48: #{lstm_block_forward.7} parent=35 // pred_fallthru
          _
        // Predicated region
        $region49: #{lstm_block_forward.7} parent=35 // pred_check
          %p589 = pneg %p143
        $region50: #{lstm_block_forward.7} parent=35 // pred_check_branch
          %591 = sbr.rel (%p589) target = $region52
        $region51: #{lstm_block_forward.7} parent=35 // pred_region
          %s593 = ssub.s32 32, 32
          %594 = vsyncadd [#allocation5], %s593
          %s596 = sshll.u32 [#allocation4], 4
          %s597 = int_to_ptr.vmem [resolvable:$true] %s596
          %599 = dma.vmem_to_hbm [thread:$0]  %s597, 32, %s5, [#allocation5]
        $region52: #{lstm_block_forward.7} parent=35 // pred_fallthru
          _
        // Predicated region
        $region53: #{lstm_block_forward.7} parent=35 // pred_check
          %p600 = pneg %p164
        $region54: #{lstm_block_forward.7} parent=35 // pred_check_branch
          %602 = sbr.rel (%p600) target = $region56
        $region55: #{lstm_block_forward.7} parent=35 // pred_region
          %s604 = ssub.s32 32, 32
          %605 = vsyncadd [#allocation7], %s604
          %s607 = sshll.u32 [#allocation6], 4
          %s608 = int_to_ptr.vmem [resolvable:$true] %s607
          %610 = dma.vmem_to_hbm [thread:$0]  %s608, 32, %s6, [#allocation7]
        $region56: #{lstm_block_forward.7} parent=35 // pred_fallthru
          _
        // Predicated region
        $region57: #{lstm_block_forward.7} parent=35 // pred_check
          %p611 = pneg %p122
        $region58: #{lstm_block_forward.7} parent=35 // pred_check_branch
          %613 = sbr.rel (%p611) target = $region60
        $region59: #{lstm_block_forward.7} parent=35 // pred_region
          _
        $region60: #{lstm_block_forward.7} parent=35 // pred_fallthru
          _
        // Predicated region
        $region61: #{lstm_block_forward.7} parent=35 // pred_check
          %p614 = pneg %p143
        $region62: #{lstm_block_forward.7} parent=35 // pred_check_branch
          %616 = sbr.rel (%p614) target = $region64
        $region63: #{lstm_block_forward.7} parent=35 // pred_region
          %617 = dma.done [#allocation5], 32
        $region64: #{lstm_block_forward.7} parent=35 // pred_fallthru
          _
        // Predicated region
        $region65: #{lstm_block_forward.7} parent=35 // pred_check
          %p618 = pneg %p164
        $region66: #{lstm_block_forward.7} parent=35 // pred_check_branch
          %620 = sbr.rel (%p618) target = $region68
        $region67: #{lstm_block_forward.7} parent=35 // pred_region
          %621 = dma.done [#allocation7], 32
        $region68: #{lstm_block_forward.7} parent=35 // pred_fallthru
          _
      $region36: #{lstm_block_forward.7} parent=5 // pred_fallthru
        _
      %p622 = scmp.le.s32.totalorder 2, %s15
      // Predicated region
      $region69: #{lstm_block_forward.7} parent=5 // pred_check
        %p623 = pneg %p622
      $region70: #{lstm_block_forward.7} parent=5 // pred_check_branch
        %625 = sbr.rel (%p623) target = $region72
      $region71: #{lstm_block_forward.7} parent=5 // pred_region
        %s626 = ssub.s32 %s15, 2
      $region72: #{lstm_block_forward.7} parent=5 // pred_fallthru
        _
    $region6: #{lstm_block_forward.7} parent=1 // loop_footer
      %s19 = sadd.s32 1, %s15
    $region7: #{lstm_block_forward.7} parent=1 // loop_footer_branch
      %14 = sbr.rel target = $region3
    $region8: #{lstm_block_forward.7} parent=1 // loop_exit
      _
    %627 = vsyncpa [#allocation5], 1
    %s628 = scalar_lea.sflag [#allocation5], 1
    %629 = vsyncpa %s628, 1
    %630 = vsyncpa [#allocation7], 1

// kernel: lstm_block_forward.5
$region0: #{lstm_block_forward.5}
  #allocation0 [shape = 'u32[]', space=smem, size = 0x4, offset = 0x4, fixed_abs, tag = 'smem constant byte address 0x4 - core index']
  #allocation1 [shape = 'u32[144,128]{1,0:T(1,128)}', space=vmem, size = 0x12000, scoped, tag = 'internal scratch']
  #allocation2 [shape = 'f32[2,32]{1,0:T(2,128)}', space=vmem, size = 0x400, scoped, tag = 'scratch operand']
  #allocation3 [shape = 'f32[2,32]{1,0:T(2,128)}', space=vmem, size = 0x400, scoped, tag = 'scratch operand']
  %s0 = inlined_call_operand.vmem [shape: f32[8,4,2,32], index: 0, kind: input, shape index: {}]
  %s1 = inlined_call_operand.vmem [shape: f32[4,32,32], index: 1, kind: input, shape index: {}]
  %s2 = inlined_call_operand.vmem [shape: f32[2,32], index: 2, kind: input, shape index: {}, may-alias: {2,3}]
  %s3 = inlined_call_operand.vmem [shape: f32[2,32], index: 3, kind: input, shape index: {}, may-alias: {2,3}]
  %s4 = inlined_call_operand.vmem [shape: f32[8,2,32], index: 4, kind: output, shape index: {0}]
  %s5 = inlined_call_operand.vmem [shape: f32[2,32], index: 5, kind: output, shape index: {1}]
  %s6 = inlined_call_operand.vmem [shape: f32[2,32], index: 6, kind: output, shape index: {2}]
  %7 = xla_tuple %s4, %s5, %s6
  %s8 = sld [smem:[#allocation0]]
  $region73: #{lstm_block_forward.5} parent=0
    _
  %s10 = ssub.s32 1, %s8
  %s11 = scalar_select 0, %s10, %s8
  loop: start=0, step=1, limit=10
  $region2: #{lstm_block_forward.5} parent=0 // loop_pre_header
    _
  $region3: #{lstm_block_forward.5} parent=0 // loop_header
    %s13 = sphi 0, %s17
    %p14 = scmp.ge.s32.totalorder %s13, 10
    %s23 = sphi 0, %s25
    %s26 = sphi 0, %s23
    %s27 = sphi 0, %s26
    %s43 = sphi 0, %s27
    %s47 = sphi 0, %s47
    %s49 = sphi 0, %s47
    %s50 = sphi 0, %s49
    %s64 = sphi 0, %s50
    %s68 = sphi 0, %s68
    %s70 = sphi 0, %s68
    %s71 = sphi 0, %s70
    %s85 = sphi 0, %s71
    %s89 = sphi 0, %s89
    %s91 = sphi 0, %s89
    %s92 = sphi 0, %s91
    %s106 = sphi 0, %s92
    %s110 = sphi 0, %s110
    %s112 = sphi 0, %s110
    %s113 = sphi 0, %s112
    %s127 = sphi 0, %s113
    %s131 = sphi 0, %s131
    %s133 = sphi 0, %s131
    %s134 = sphi 0, %s133
    %s148 = sphi 0, %s134
    %s152 = sphi 0, %s152
    %s154 = sphi 0, %s152
    %s155 = sphi 0, %s154
    %s169 = sphi 0, %s155
  $region4: #{lstm_block_forward.5} parent=0 // loop_header_branch
    %16 = sbr.rel (%p14) target = $region8
  $region5: #{lstm_block_forward.5} parent=0 // loop_body
    %s18 = ssub.s32 %s13, 1
    %s19 = ssub.s32 %s13, 2
    %s20 = sadd.s32 %s13, 1
    %s21 = ssub.s32 %s13, %s20
    %p22 = scmp.eq.s32.totalorder %s21, 0
    %s24 = sadd.s32 %s23, 1
    %s25 = scalar_select %p22, %s23, %s24
    %p28 = pneg %p22
    %p29 = scmp.eq.s32.totalorder %s13, 7
    %p30 = por %p28, %p29
    %p31 = scmp.ne.s32.totalorder %s23, %s26
    %p32 = scmp.eq.s32.totalorder %s13, 0
    %p33 = por %p31, %p32
    %p34 = scmp.ne.s32.totalorder %s23, %s26
    %p35 = scmp.eq.s32.totalorder %s18, 7
    %p36 = por %p34, %p35
    %p37 = scmp.ne.s32.totalorder %s26, %s27
    %p38 = scmp.eq.s32.totalorder %s18, 0
    %p39 = por %p37, %p38
    %p40 = scmp.ne.s32.totalorder %s26, %s27
    %p41 = scmp.eq.s32.totalorder %s19, 7
    %p42 = por %p40, %p41
    %p44 = scmp.ne.s32.totalorder %s27, %s43
    %p45 = scmp.eq.s32.totalorder %s19, 0
    %p46 = por %p44, %p45
    %s48 = sadd.s32 %s47, 1
    %p51 = scmp.eq.s32.totalorder %s13, 7
    %p52 = scmp.ne.s32.totalorder %s47, %s49
    %p53 = scmp.eq.s32.totalorder %s13, 0
    %p54 = por %p52, %p53
    %p55 = scmp.ne.s32.totalorder %s47, %s49
    %p56 = scmp.eq.s32.totalorder %s18, 7
    %p57 = por %p55, %p56
    %p58 = scmp.ne.s32.totalorder %s49, %s50
    %p59 = scmp.eq.s32.totalorder %s18, 0
    %p60 = por %p58, %p59
    %p61 = scmp.ne.s32.totalorder %s49, %s50
    %p62 = scmp.eq.s32.totalorder %s19, 7
    %p63 = por %p61, %p62
    %p65 = scmp.ne.s32.totalorder %s50, %s64
    %p66 = scmp.eq.s32.totalorder %s19, 0
    %p67 = por %p65, %p66
    %s69 = sadd.s32 %s68, 1
    %p72 = scmp.eq.s32.totalorder %s13, 7
    %p73 = scmp.ne.s32.totalorder %s68, %s70
    %p74 = scmp.eq.s32.totalorder %s13, 0
    %p75 = por %p73, %p74
    %p76 = scmp.ne.s32.totalorder %s68, %s70
    %p77 = scmp.eq.s32.totalorder %s18, 7
    %p78 = por %p76, %p77
    %p79 = scmp.ne.s32.totalorder %s70, %s71
    %p80 = scmp.eq.s32.totalorder %s18, 0
    %p81 = por %p79, %p80
    %p82 = scmp.ne.s32.totalorder %s70, %s71
    %p83 = scmp.eq.s32.totalorder %s19, 7
    %p84 = por %p82, %p83
    %p86 = scmp.ne.s32.totalorder %s71, %s85
    %p87 = scmp.eq.s32.totalorder %s19, 0
    %p88 = por %p86, %p87
    %s90 = sadd.s32 %s89, 1
    %p93 = scmp.eq.s32.totalorder %s13, 7
    %p94 = scmp.ne.s32.totalorder %s89, %s91
    %p95 = scmp.eq.s32.totalorder %s13, 0
    %p96 = por %p94, %p95
    %p97 = scmp.ne.s32.totalorder %s89, %s91
    %p98 = scmp.eq.s32.totalorder %s18, 7
    %p99 = por %p97, %p98
    %p100 = scmp.ne.s32.totalorder %s91, %s92
    %p101 = scmp.eq.s32.totalorder %s18, 0
    %p102 = por %p100, %p101
    %p103 = scmp.ne.s32.totalorder %s91, %s92
    %p104 = scmp.eq.s32.totalorder %s19, 7
    %p105 = por %p103, %p104
    %p107 = scmp.ne.s32.totalorder %s92, %s106
    %p108 = scmp.eq.s32.totalorder %s19, 0
    %p109 = por %p107, %p108
    %s111 = sadd.s32 %s110, 1
    %p114 = scmp.eq.s32.totalorder %s13, 7
    %p115 = scmp.ne.s32.totalorder %s110, %s112
    %p116 = scmp.eq.s32.totalorder %s13, 0
    %p117 = por %p115, %p116
    %p118 = scmp.ne.s32.totalorder %s110, %s112
    %p119 = scmp.eq.s32.totalorder %s18, 7
    %p120 = por %p118, %p119
    %p121 = scmp.ne.s32.totalorder %s112, %s113
    %p122 = scmp.eq.s32.totalorder %s18, 0
    %p123 = por %p121, %p122
    %p124 = scmp.ne.s32.totalorder %s112, %s113
    %p125 = scmp.eq.s32.totalorder %s19, 7
    %p126 = por %p124, %p125
    %p128 = scmp.ne.s32.totalorder %s113, %s127
    %p129 = scmp.eq.s32.totalorder %s19, 0
    %p130 = por %p128, %p129
    %s132 = sadd.s32 %s131, 1
    %p135 = scmp.eq.s32.totalorder %s13, 7
    %p136 = scmp.ne.s32.totalorder %s131, %s133
    %p137 = scmp.eq.s32.totalorder %s13, 0
    %p138 = por %p136, %p137
    %p139 = scmp.ne.s32.totalorder %s131, %s133
    %p140 = scmp.eq.s32.totalorder %s18, 7
    %p141 = por %p139, %p140
    %p142 = scmp.ne.s32.totalorder %s133, %s134
    %p143 = scmp.eq.s32.totalorder %s18, 0
    %p144 = por %p142, %p143
    %p145 = scmp.ne.s32.totalorder %s133, %s134
    %p146 = scmp.eq.s32.totalorder %s19, 7
    %p147 = por %p145, %p146
    %p149 = scmp.ne.s32.totalorder %s134, %s148
    %p150 = scmp.eq.s32.totalorder %s19, 0
    %p151 = por %p149, %p150
    %s153 = sadd.s32 %s152, 1
    %p156 = scmp.eq.s32.totalorder %s13, 7
    %p157 = scmp.ne.s32.totalorder %s152, %s154
    %p158 = scmp.eq.s32.totalorder %s13, 0
    %p159 = por %p157, %p158
    %p160 = scmp.ne.s32.totalorder %s152, %s154
    %p161 = scmp.eq.s32.totalorder %s18, 7
    %p162 = por %p160, %p161
    %p163 = scmp.ne.s32.totalorder %s154, %s155
    %p164 = scmp.eq.s32.totalorder %s18, 0
    %p165 = por %p163, %p164
    %p166 = scmp.ne.s32.totalorder %s154, %s155
    %p167 = scmp.eq.s32.totalorder %s19, 7
    %p168 = por %p166, %p167
    %p170 = scmp.ne.s32.totalorder %s155, %s169
    %p171 = scmp.eq.s32.totalorder %s19, 0
    %p172 = por %p170, %p171
    %p173 = scmp.le.s32.totalorder 1, %s13
    %p174 = scmp.lt.s32.totalorder %s13, 9
    %p175 = pnand %p173, %p174
    %p176 = pneg %p175
    // Predicated region
    $region9: #{lstm_block_forward.5} parent=5 // pred_check
      _
    $region10: #{lstm_block_forward.5} parent=5 // pred_check_branch
      %178 = sbr.rel (%p175) target = $region12
    $region11: #{lstm_block_forward.5} parent=5 // pred_region
      %s179 = ssub.s32 %s13, 1
      // Predicated region
      $region13: #{lstm_block_forward.5} parent=11 // pred_check
        %p180 = pneg %p60
      $region14: #{lstm_block_forward.5} parent=11 // pred_check_branch
        %182 = sbr.rel (%p180) target = $region16
      $region15: #{lstm_block_forward.5} parent=11 // pred_region
        _
      $region16: #{lstm_block_forward.5} parent=11 // pred_fallthru
        _
      // Predicated region
      $region17: #{lstm_block_forward.5} parent=11 // pred_check
        %p183 = pneg %p81
      $region18: #{lstm_block_forward.5} parent=11 // pred_check_branch
        %185 = sbr.rel (%p183) target = $region20
      $region19: #{lstm_block_forward.5} parent=11 // pred_region
        _
      $region20: #{lstm_block_forward.5} parent=11 // pred_fallthru
        _
      // Predicated region
      $region21: #{lstm_block_forward.5} parent=11 // pred_check
        %p186 = pneg %p102
      $region22: #{lstm_block_forward.5} parent=11 // pred_check_branch
        %188 = sbr.rel (%p186) target = $region24
      $region23: #{lstm_block_forward.5} parent=11 // pred_region
        _
      $region24: #{lstm_block_forward.5} parent=11 // pred_fallthru
        _
    $region12: #{lstm_block_forward.5} parent=5 // pred_fallthru
      _
    %p189 = scmp.lt.s32.totalorder %s13, 8
    // Predicated region
    $region25: #{lstm_block_forward.5} parent=5 // pred_check
      %p190 = pneg %p189
    $region26: #{lstm_block_forward.5} parent=5 // pred_check_branch
      %192 = sbr.rel (%p190) target = $region28
    $region27: #{lstm_block_forward.5} parent=5 // pred_region
      // Predicated region
      $region29: #{lstm_block_forward.5} parent=27 // pred_check
        %p193 = pneg %p33
      $region30: #{lstm_block_forward.5} parent=27 // pred_check_branch
        %195 = sbr.rel (%p193) target = $region32
      $region31: #{lstm_block_forward.5} parent=27 // pred_region
        %p196 = scmp.lt.s32.totalorder %s13, 7
        %s197 = scalar_select %p196, %s13, 7
        %s198 = smul.addr %s197, 4
        %s199 = smul.addr %s198, 2
        %s200 = scalar_lea.vmem %s0, %s199
      $region32: #{lstm_block_forward.5} parent=27 // pred_fallthru
        _
    $region28: #{lstm_block_forward.5} parent=5 // pred_fallthru
      _
    %p201 = scmp.le.s32.totalorder 1, %s13
    %p202 = scmp.lt.s32.totalorder %s13, 9
    %p203 = pnand %p201, %p202
    %p204 = pneg %p203
    // Predicated region
    $region33: #{lstm_block_forward.5} parent=5 // pred_check
      _
    $region34: #{lstm_block_forward.5} parent=5 // pred_check_branch
      %206 = sbr.rel (%p203) target = $region36
    $region35: #{lstm_block_forward.5} parent=5 // pred_region
      %s207 = ssub.s32 %s13, 1
      %p208 = scmp.lt.s32.totalorder %s18, 7
      %s209 = scalar_select %p208, %s18, 7
      %s210 = smul.addr %s209, 4
      %s211 = smul.addr %s210, 2
      %s212 = scalar_lea.vmem %s0, %s211
      %p213 = pneg %p39
      %p214 = pneg %p36
      %p215 = pneg %p60
      %p216 = pneg %p57
      %p217 = pneg %p81
      %p218 = pneg %p78
      %p219 = pneg %p102
      %p220 = pneg %p99
      %p221 = pneg %p123
      %p222 = pneg %p120
      %p223 = pneg %p144
      %p224 = pneg %p141
      %p225 = pneg %p165
      %p226 = pneg %p162
      %p227 = scmp.lt.s32.totalorder %s18, 7
      %s228 = scalar_select %p227, %s18, 7
      %s229 = smul.addr %s228, 4
      %s230 = smul.addr %s229, 2
      %s231 = scalar_lea.vmem %s0, %s230
      %p232 = scmp.eq.s32.totalorder %s18, 0
      // Predicated region
      $region37: #{lstm_block_forward.5} parent=35 // pred_check
        %p233 = pneg %p232
      $region38: #{lstm_block_forward.5} parent=35 // pred_check_branch
        %235 = sbr.rel (%p233) target = $region40
      $region39: #{lstm_block_forward.5} parent=35 // pred_region
        %v236 = vld [vmem:[%s2] sm:$0x3]
        %vm237 = vcmask 254976
        %238 = vst.msk [vmem:[#allocation2] sm:$0x3] %vm237, %v236
        %v239 = vld [vmem:[%s3] sm:$0x3]
        %240 = vst.msk [vmem:[#allocation3] sm:$0x3] %vm237, %v239
      $region40: #{lstm_block_forward.5} parent=35 // pred_fallthru
        _
      %v241 = vld [vmem:[#allocation2] sm:$0x3]
      %v242 = vld [vmem:[#allocation3] sm:$0x3]
      %v243 = vld [vmem:[%s231] sm:$0x3]
      %v244 = vld [vmem:[%s231 + $0x2] sm:$0x3]
      %v245 = vld [vmem:[%s231 + $0x4] sm:$0x3]
      %v246 = vld [vmem:[%s231 + $0x6] sm:$0x3]
      %v247 = vld [vmem:[%s1] sm:$0xff]
      %v248 = vld [vmem:[%s1 + $0x8] sm:$0xff]
      %v249 = vld [vmem:[%s1 + $0x10] sm:$0xff]
      %v250 = vld [vmem:[%s1 + $0x18] sm:$0xff]
      %vm251 = vcmask 261120
      %v253 = vsel %vm251, %v241, 0
      %255 = vmatprep.subr.mxu0 0.0
      %256 = vmatpush1.msra.mxu0 %v247
      %257 = vmatprep.subr.mxu0 0.0
      %258 = vmatpush1.msra.mxu0 %v248
      %259 = vmatprep.subr.mxu0 0.0
      %260 = vmatpush1.msra.mxu0 %v249
      %261 = vmatprep.subr.mxu0 0.0
      %262 = vmatpush1.msra.mxu0 %v250
      %263 = vmatprep.subr.mxu0 0.0
      %264 = vmatpush1.msra.mxu0 0.0
      %265 = vmatprep.subr.mxu0 0.0
      %266 = vmatpush1.msra.mxu0 0.0
      %267 = vmatprep.subr.mxu0 0.0
      %268 = vmatpush1.msra.mxu0 0.0
      %269 = vmatprep.subr.mxu0 0.0
      %270 = vmatpush1.msra.mxu0 0.0
      %271 = vmatprep.subr.mxu0 0.0
      %272 = vmatpush1.msra.mxu0 0.0
      %273 = vmatprep.subr.mxu0 0.0
      %274 = vmatpush1.msra.mxu0 0.0
      %275 = vmatprep.subr.mxu0 0.0
      %276 = vmatpush1.msra.mxu0 0.0
      %277 = vmatprep.subr.mxu0 0.0
      %278 = vmatpush1.msra.mxu0 0.0
      %279 = vmatprep.subr.mxu0 0.0
      %280 = vmatpush1.msra.mxu0 0.0
      %281 = vmatprep.subr.mxu0 0.0
      %282 = vmatpush1.msra.mxu0 0.0
      %283 = vmatprep.subr.mxu0 0.0
      %284 = vmatpush1.msra.mxu0 0.0
      %285 = vmatprep.subr.mxu0 0.0
      %286 = vmatpush1.msra.mxu0 0.0
      %287 = vmatprep.subr.mxu0 0.0
      %288 = vmatpush1.msra.mxu0 0.0
      %289 = vmatprep.subr.mxu0 0.0
      %290 = vmatpush1.msra.mxu0 0.0
      %291 = vmatprep.subr.mxu0 0.0
      %292 = vmatpush1.msra.mxu0 0.0
      %293 = vmatprep.subr.mxu0 0.0
      %294 = vmatpush1.msra.mxu0 0.0
      %295 = vmatprep.subr.mxu0 0.0
      %296 = vmatpush1.msra.mxu0 0.0
      %297 = vmatprep.subr.mxu0 0.0
      %298 = vmatpush1.msra.mxu0 0.0
      %299 = vmatprep.subr.mxu0 0.0
      %300 = vmatpush1.msra.mxu0 0.0
      %301 = vmatprep.subr.mxu0 0.0
      %302 = vmatpush1.msra.mxu0 0.0
      %303 = vmatprep.subr.mxu0 0.0
      %304 = vmatpush1.msra.mxu0 0.0
      %305 = vmatprep.subr.mxu0 0.0
      %306 = vmatpush1.msra.mxu0 0.0
      %307 = vmatprep.subr.mxu0 0.0
      %308 = vmatpush1.msra.mxu0 0.0
      %309 = vmatprep.subr.mxu0 0.0
      %310 = vmatpush1.msra.mxu0 0.0
      %311 = vmatprep.subr.mxu0 0.0
      %312 = vmatpush1.msra.mxu0 0.0
      %313 = vmatprep.subr.mxu0 0.0
      %314 = vmatpush1.msra.mxu0 0.0
      %315 = vmatprep.subr.mxu0 0.0
      %316 = vmatpush1.msra.mxu0 0.0
      %317 = vmatprep.subr.mxu0 0.0
      %318 = vmatpush1.msra.mxu0 0.0
      %319 = vmatprep.mubr.f32.mxu0 0.0
      %320 = vmatmul.mubr.f32.gmra.mrb[0].mxu0 %v253
      %v321 = vpop.f32.mrb[0].mxu0
      %v322 = vadd.f32 0.0, %v321
      %v323 = vpop.f32.mrb[0].mxu0
      %324 = vdwg.mxu0
      %v325 = vadd.f32 %v243, %v322
      %s326 = scalar_lea.vmem %s1, 32
      %v327 = vld [vmem:[%s326] sm:$0xff]
      %v328 = vld [vmem:[%s326 + $0x8] sm:$0xff]
      %v329 = vld [vmem:[%s326 + $0x10] sm:$0xff]
      %v330 = vld [vmem:[%s326 + $0x18] sm:$0xff]
      %331 = vmatprep.subr.mxu0 0.0
      %332 = vmatpush1.msra.mxu0 %v327
      %333 = vmatprep.subr.mxu0 0.0
      %334 = vmatpush1.msra.mxu0 %v328
      %335 = vmatprep.subr.mxu0 0.0
      %336 = vmatpush1.msra.mxu0 %v329
      %337 = vmatprep.subr.mxu0 0.0
      %338 = vmatpush1.msra.mxu0 %v330
      %339 = vmatprep.subr.mxu0 0.0
      %340 = vmatpush1.msra.mxu0 0.0
      %341 = vmatprep.subr.mxu0 0.0
      %342 = vmatpush1.msra.mxu0 0.0
      %343 = vmatprep.subr.mxu0 0.0
      %344 = vmatpush1.msra.mxu0 0.0
      %345 = vmatprep.subr.mxu0 0.0
      %346 = vmatpush1.msra.mxu0 0.0
      %347 = vmatprep.subr.mxu0 0.0
      %348 = vmatpush1.msra.mxu0 0.0
      %349 = vmatprep.subr.mxu0 0.0
      %350 = vmatpush1.msra.mxu0 0.0
      %351 = vmatprep.subr.mxu0 0.0
      %352 = vmatpush1.msra.mxu0 0.0
      %353 = vmatprep.subr.mxu0 0.0
      %354 = vmatpush1.msra.mxu0 0.0
      %355 = vmatprep.subr.mxu0 0.0
      %356 = vmatpush1.msra.mxu0 0.0
      %357 = vmatprep.subr.mxu0 0.0
      %358 = vmatpush1.msra.mxu0 0.0
      %359 = vmatprep.subr.mxu0 0.0
      %360 = vmatpush1.msra.mxu0 0.0
      %361 = vmatprep.subr.mxu0 0.0
      %362 = vmatpush1.msra.mxu0 0.0
      %363 = vmatprep.subr.mxu0 0.0
      %364 = vmatpush1.msra.mxu0 0.0
      %365 = vmatprep.subr.mxu0 0.0
      %366 = vmatpush1.msra.mxu0 0.0
      %367 = vmatprep.subr.mxu0 0.0
      %368 = vmatpush1.msra.mxu0 0.0
      %369 = vmatprep.subr.mxu0 0.0
      %370 = vmatpush1.msra.mxu0 0.0
      %371 = vmatprep.subr.mxu0 0.0
      %372 = vmatpush1.msra.mxu0 0.0
      %373 = vmatprep.subr.mxu0 0.0
      %374 = vmatpush1.msra.mxu0 0.0
      %375 = vmatprep.subr.mxu0 0.0
      %376 = vmatpush1.msra.mxu0 0.0
      %377 = vmatprep.subr.mxu0 0.0
      %378 = vmatpush1.msra.mxu0 0.0
      %379 = vmatprep.subr.mxu0 0.0
      %380 = vmatpush1.msra.mxu0 0.0
      %381 = vmatprep.subr.mxu0 0.0
      %382 = vmatpush1.msra.mxu0 0.0
      %383 = vmatprep.subr.mxu0 0.0
      %384 = vmatpush1.msra.mxu0 0.0
      %385 = vmatprep.subr.mxu0 0.0
      %386 = vmatpush1.msra.mxu0 0.0
      %387 = vmatprep.subr.mxu0 0.0
      %388 = vmatpush1.msra.mxu0 0.0
      %389 = vmatprep.subr.mxu0 0.0
      %390 = vmatpush1.msra.mxu0 0.0
      %391 = vmatprep.subr.mxu0 0.0
      %392 = vmatpush1.msra.mxu0 0.0
      %393 = vmatprep.subr.mxu0 0.0
      %394 = vmatpush1.msra.mxu0 0.0
      %395 = vmatprep.mubr.f32.mxu0 0.0
      %396 = vmatmul.mubr.f32.gmra.mrb[0].mxu0 %v253
      %v397 = vpop.f32.mrb[0].mxu0
      %v398 = vadd.f32 0.0, %v397
      %v399 = vpop.f32.mrb[0].mxu0
      %400 = vdwg.mxu0
      %v401 = vadd.f32 %v244, %v398
      %s402 = scalar_lea.vmem %s1, 64
      %v403 = vld [vmem:[%s402] sm:$0xff]
      %v404 = vld [vmem:[%s402 + $0x8] sm:$0xff]
      %v405 = vld [vmem:[%s402 + $0x10] sm:$0xff]
      %v406 = vld [vmem:[%s402 + $0x18] sm:$0xff]
      %407 = vmatprep.subr.mxu0 0.0
      %408 = vmatpush1.msra.mxu0 %v403
      %409 = vmatprep.subr.mxu0 0.0
      %410 = vmatpush1.msra.mxu0 %v404
      %411 = vmatprep.subr.mxu0 0.0
      %412 = vmatpush1.msra.mxu0 %v405
      %413 = vmatprep.subr.mxu0 0.0
      %414 = vmatpush1.msra.mxu0 %v406
      %415 = vmatprep.subr.mxu0 0.0
      %416 = vmatpush1.msra.mxu0 0.0
      %417 = vmatprep.subr.mxu0 0.0
      %418 = vmatpush1.msra.mxu0 0.0
      %419 = vmatprep.subr.mxu0 0.0
      %420 = vmatpush1.msra.mxu0 0.0
      %421 = vmatprep.subr.mxu0 0.0
      %422 = vmatpush1.msra.mxu0 0.0
      %423 = vmatprep.subr.mxu0 0.0
      %424 = vmatpush1.msra.mxu0 0.0
      %425 = vmatprep.subr.mxu0 0.0
      %426 = vmatpush1.msra.mxu0 0.0
      %427 = vmatprep.subr.mxu0 0.0
      %428 = vmatpush1.msra.mxu0 0.0
      %429 = vmatprep.subr.mxu0 0.0
      %430 = vmatpush1.msra.mxu0 0.0
      %431 = vmatprep.subr.mxu0 0.0
      %432 = vmatpush1.msra.mxu0 0.0
      %433 = vmatprep.subr.mxu0 0.0
      %434 = vmatpush1.msra.mxu0 0.0
      %435 = vmatprep.subr.mxu0 0.0
      %436 = vmatpush1.msra.mxu0 0.0
      %437 = vmatprep.subr.mxu0 0.0
      %438 = vmatpush1.msra.mxu0 0.0
      %439 = vmatprep.subr.mxu0 0.0
      %440 = vmatpush1.msra.mxu0 0.0
      %441 = vmatprep.subr.mxu0 0.0
      %442 = vmatpush1.msra.mxu0 0.0
      %443 = vmatprep.subr.mxu0 0.0
      %444 = vmatpush1.msra.mxu0 0.0
      %445 = vmatprep.subr.mxu0 0.0
      %446 = vmatpush1.msra.mxu0 0.0
      %447 = vmatprep.subr.mxu0 0.0
      %448 = vmatpush1.msra.mxu0 0.0
      %449 = vmatprep.subr.mxu0 0.0
      %450 = vmatpush1.msra.mxu0 0.0
      %451 = vmatprep.subr.mxu0 0.0
      %452 = vmatpush1.msra.mxu0 0.0
      %453 = vmatprep.subr.mxu0 0.0
      %454 = vmatpush1.msra.mxu0 0.0
      %455 = vmatprep.subr.mxu0 0.0
      %456 = vmatpush1.msra.mxu0 0.0
      %457 = vmatprep.subr.mxu0 0.0
      %458 = vmatpush1.msra.mxu0 0.0
      %459 = vmatprep.subr.mxu0 0.0
      %460 = vmatpush1.msra.mxu0 0.0
      %461 = vmatprep.subr.mxu0 0.0
      %462 = vmatpush1.msra.mxu0 0.0
      %463 = vmatprep.subr.mxu0 0.0
      %464 = vmatpush1.msra.mxu0 0.0
      %465 = vmatprep.subr.mxu0 0.0
      %466 = vmatpush1.msra.mxu0 0.0
      %467 = vmatprep.subr.mxu0 0.0
      %468 = vmatpush1.msra.mxu0 0.0
      %469 = vmatprep.subr.mxu0 0.0
      %470 = vmatpush1.msra.mxu0 0.0
      %471 = vmatprep.mubr.f32.mxu0 0.0
      %472 = vmatmul.mubr.f32.gmra.mrb[0].mxu0 %v253
      %v473 = vpop.f32.mrb[0].mxu0
      %v474 = vadd.f32 0.0, %v473
      %v475 = vpop.f32.mrb[0].mxu0
      %476 = vdwg.mxu0
      %v477 = vadd.f32 %v245, %v474
      %s478 = scalar_lea.vmem %s1, 96
      %v479 = vld [vmem:[%s478] sm:$0xff]
      %v480 = vld [vmem:[%s478 + $0x8] sm:$0xff]
      %v481 = vld [vmem:[%s478 + $0x10] sm:$0xff]
      %v482 = vld [vmem:[%s478 + $0x18] sm:$0xff]
      %483 = vmatprep.subr.mxu0 0.0
      %484 = vmatpush1.msra.mxu0 %v479
      %485 = vmatprep.subr.mxu0 0.0
      %486 = vmatpush1.msra.mxu0 %v480
      %487 = vmatprep.subr.mxu0 0.0
      %488 = vmatpush1.msra.mxu0 %v481
      %489 = vmatprep.subr.mxu0 0.0
      %490 = vmatpush1.msra.mxu0 %v482
      %491 = vmatprep.subr.mxu0 0.0
      %492 = vmatpush1.msra.mxu0 0.0
      %493 = vmatprep.subr.mxu0 0.0
      %494 = vmatpush1.msra.mxu0 0.0
      %495 = vmatprep.subr.mxu0 0.0
      %496 = vmatpush1.msra.mxu0 0.0
      %497 = vmatprep.subr.mxu0 0.0
      %498 = vmatpush1.msra.mxu0 0.0
      %499 = vmatprep.subr.mxu0 0.0
      %500 = vmatpush1.msra.mxu0 0.0
      %501 = vmatprep.subr.mxu0 0.0
      %502 = vmatpush1.msra.mxu0 0.0
      %503 = vmatprep.subr.mxu0 0.0
      %504 = vmatpush1.msra.mxu0 0.0
      %505 = vmatprep.subr.mxu0 0.0
      %506 = vmatpush1.msra.mxu0 0.0
      %507 = vmatprep.subr.mxu0 0.0
      %508 = vmatpush1.msra.mxu0 0.0
      %509 = vmatprep.subr.mxu0 0.0
      %510 = vmatpush1.msra.mxu0 0.0
      %511 = vmatprep.subr.mxu0 0.0
      %512 = vmatpush1.msra.mxu0 0.0
      %513 = vmatprep.subr.mxu0 0.0
      %514 = vmatpush1.msra.mxu0 0.0
      %515 = vmatprep.subr.mxu0 0.0
      %516 = vmatpush1.msra.mxu0 0.0
      %517 = vmatprep.subr.mxu0 0.0
      %518 = vmatpush1.msra.mxu0 0.0
      %519 = vmatprep.subr.mxu0 0.0
      %520 = vmatpush1.msra.mxu0 0.0
      %521 = vmatprep.subr.mxu0 0.0
      %522 = vmatpush1.msra.mxu0 0.0
      %523 = vmatprep.subr.mxu0 0.0
      %524 = vmatpush1.msra.mxu0 0.0
      %525 = vmatprep.subr.mxu0 0.0
      %526 = vmatpush1.msra.mxu0 0.0
      %527 = vmatprep.subr.mxu0 0.0
      %528 = vmatpush1.msra.mxu0 0.0
      %529 = vmatprep.subr.mxu0 0.0
      %530 = vmatpush1.msra.mxu0 0.0
      %531 = vmatprep.subr.mxu0 0.0
      %532 = vmatpush1.msra.mxu0 0.0
      %533 = vmatprep.subr.mxu0 0.0
      %534 = vmatpush1.msra.mxu0 0.0
      %535 = vmatprep.subr.mxu0 0.0
      %536 = vmatpush1.msra.mxu0 0.0
      %537 = vmatprep.subr.mxu0 0.0
      %538 = vmatpush1.msra.mxu0 0.0
      %539 = vmatprep.subr.mxu0 0.0
      %540 = vmatpush1.msra.mxu0 0.0
      %541 = vmatprep.subr.mxu0 0.0
      %542 = vmatpush1.msra.mxu0 0.0
      %543 = vmatprep.subr.mxu0 0.0
      %544 = vmatpush1.msra.mxu0 0.0
      %545 = vmatprep.subr.mxu0 0.0
      %546 = vmatpush1.msra.mxu0 0.0
      %547 = vmatprep.mubr.f32.mxu0 0.0
      %548 = vmatmul.mubr.f32.gmra.mrb[0].mxu0 %v253
      %v549 = vpop.f32.mrb[0].mxu0
      %v550 = vadd.f32 0.0, %v549
      %v551 = vpop.f32.mrb[0].mxu0
      %552 = vdwg.mxu0
      %v553 = vadd.f32 %v246, %v550
      %v554 = vxor.u32 %v325, 2147483648
      %v555 = vmul.f32 %v554, 1.442695
      %v556 = vpow.pop %v555
      %v557 = vadd.f32 %v556, 1.0
      %v558 = vrcp.pop %v557
      %v559 = vmul.f32 1.0, %v558
      %v560 = vmul.f32 %v242, %v559
      %v561 = vxor.u32 %v401, 2147483648
      %v562 = vmul.f32 %v561, 1.442695
      %v563 = vpow.pop %v562
      %v564 = vadd.f32 %v563, 1.0
      %v565 = vrcp.pop %v564
      %v566 = vmul.f32 1.0, %v565
      %v567 = vtanh.pop %v477
      %v568 = vmul.f32 %v566, %v567
      %v569 = vadd.f32 %v560, %v568
      %v570 = vtanh.pop %v569
      %v571 = vmul.f32 %v553, %v570
      %vm572 = vcmask 254976
      %573 = vst.msk [vmem:[#allocation2] sm:$0x3] %vm572, %v571
      %574 = vst.msk [vmem:[#allocation3] sm:$0x3] %vm572, %v569
      %s575 = smul.u32 %s18, 2
      %s576 = scalar_lea.vmem %s4, %s575
      %577 = vst.msk [vmem:[%s576] sm:$0x3] %vm572, %v571
      %p578 = scmp.eq.s32.totalorder %s18, 7
      // Predicated region
      $region41: #{lstm_block_forward.5} parent=35 // pred_check
        %p579 = pneg %p578
      $region42: #{lstm_block_forward.5} parent=35 // pred_check_branch
        %581 = sbr.rel (%p579) target = $region44
      $region43: #{lstm_block_forward.5} parent=35 // pred_region
        %582 = vst.msk [vmem:[%s5] sm:$0x3] %vm572, %v571
        %583 = vst.msk [vmem:[%s6] sm:$0x3] %vm572, %v569
      $region44: #{lstm_block_forward.5} parent=35 // pred_fallthru
        _
      // Predicated region
      $region45: #{lstm_block_forward.5} parent=35 // pred_check
        %p584 = pneg %p120
      $region46: #{lstm_block_forward.5} parent=35 // pred_check_branch
        %586 = sbr.rel (%p584) target = $region48
      $region47: #{lstm_block_forward.5} parent=35 // pred_region
        _
      $region48: #{lstm_block_forward.5} parent=35 // pred_fallthru
        _
      // Predicated region
      $region49: #{lstm_block_forward.5} parent=35 // pred_check
        %p587 = pneg %p141
      $region50: #{lstm_block_forward.5} parent=35 // pred_check_branch
        %589 = sbr.rel (%p587) target = $region52
      $region51: #{lstm_block_forward.5} parent=35 // pred_region
        _
      $region52: #{lstm_block_forward.5} parent=35 // pred_fallthru
        _
      // Predicated region
      $region53: #{lstm_block_forward.5} parent=35 // pred_check
        %p590 = pneg %p162
      $region54: #{lstm_block_forward.5} parent=35 // pred_check_branch
        %592 = sbr.rel (%p590) target = $region56
      $region55: #{lstm_block_forward.5} parent=35 // pred_region
        _
      $region56: #{lstm_block_forward.5} parent=35 // pred_fallthru
        _
      // Predicated region
      $region57: #{lstm_block_forward.5} parent=35 // pred_check
        %p593 = pneg %p120
      $region58: #{lstm_block_forward.5} parent=35 // pred_check_branch
        %595 = sbr.rel (%p593) target = $region60
      $region59: #{lstm_block_forward.5} parent=35 // pred_region
        _
      $region60: #{lstm_block_forward.5} parent=35 // pred_fallthru
        _
      // Predicated region
      $region61: #{lstm_block_forward.5} parent=35 // pred_check
        %p596 = pneg %p141
      $region62: #{lstm_block_forward.5} parent=35 // pred_check_branch
        %598 = sbr.rel (%p596) target = $region64
      $region63: #{lstm_block_forward.5} parent=35 // pred_region
        _
      $region64: #{lstm_block_forward.5} parent=35 // pred_fallthru
        _
      // Predicated region
      $region65: #{lstm_block_forward.5} parent=35 // pred_check
        %p599 = pneg %p162
      $region66: #{lstm_block_forward.5} parent=35 // pred_check_branch
        %601 = sbr.rel (%p599) target = $region68
      $region67: #{lstm_block_forward.5} parent=35 // pred_region
        _
      $region68: #{lstm_block_forward.5} parent=35 // pred_fallthru
        _
    $region36: #{lstm_block_forward.5} parent=5 // pred_fallthru
      _
    %p602 = scmp.le.s32.totalorder 2, %s13
    // Predicated region
    $region69: #{lstm_block_forward.5} parent=5 // pred_check
      %p603 = pneg %p602
    $region70: #{lstm_block_forward.5} parent=5 // pred_check_branch
      %605 = sbr.rel (%p603) target = $region72
    $region71: #{lstm_block_forward.5} parent=5 // pred_region
      %s606 = ssub.s32 %s13, 2
    $region72: #{lstm_block_forward.5} parent=5 // pred_fallthru
      _
  $region6: #{lstm_block_forward.5} parent=0 // loop_footer
    %s17 = sadd.s32 1, %s13
  $region7: #{lstm_block_forward.5} parent=0 // loop_footer_branch
    %12 = sbr.rel target = $region3
  $region8: #{lstm_block_forward.5} parent=0 // loop_exit
    _

</llo_original>
